<compile_context>
chip_gen: v5e
topology: v5e:2x2
jax: 0.10.0
libtpu: 0.0.40
codegen_flags: <defaults>
</compile_context>

<pallas_src>
import functools

import jax
import jax.numpy as jnp
from jax import lax
from jax.experimental import pallas as pl
from jax.experimental.pallas import tpu as pltpu

BN_EPS = 1e-5


def _bottleneck_kernel(x_ref, mask_ref,
                       w1_ref, g1_ref, b1_ref,
                       w2_ref, g2_ref, b2_ref,
                       w3_ref, g3_ref, b3_ref,
                       o_ref, s_ref,
                       *, Wp, Mp, pad, M_valid):
    """Whole Bottleneck in one kernel.

    Layout: activations are channel-major (C, Mt) where each image is stored
    with its 3x3-conv zero border, i.e. (H+2) x (W+2) = Hp x Wp pixels,
    flattened to Mp = N*Hp*Wp interior columns plus an outer halo of
    pad = Wp+1 zero columns on each side (Mt = Mp + 2*pad).  A conv tap
    (dh, dw) is then just the column window shifted by s = dh*Wp + dw and no
    per-tap masks are needed.  The 9 taps are folded into the MXU contraction
    dimension (K = taps*Cin, capped at 128 per dot for v5e's MXU depth).
    """
    shifts = tuple(dh * Wp + dw for dh in (-1, 0, 1) for dw in (-1, 0, 1))

    def conv3x3(src_ref, w_ref):
        # src_ref: (Cin, Mt) f32 zero-padded activations; w_ref: (Cout, 9*Cin) bf16.
        cin = src_ref.shape[0]
        if 9 * cin <= 128:           # all 9 taps in one MXU push
            taps_per_dot = 9
        elif 3 * cin <= 128:         # v5e: keep K <= 128 per push (one kh row / dot)
            taps_per_dot = 3
        else:                        # TODO(synk): very wide Cin -> per-tap dots
            taps_per_dot = 1
        acc = None
        for t0 in range(0, 9, taps_per_dot):
            grp = shifts[t0:t0 + taps_per_dot]
            # Stack the shifted windows along the contraction (sublane) axis;
            # concat happens in f32 (tile-aligned rows), cast to bf16 after.
            a = jnp.concatenate(
                [src_ref[:, pad + s: pad + s + Mp] for s in grp], axis=0
            ).astype(jnp.bfloat16)
            w = w_ref[:, t0 * cin:(t0 + len(grp)) * cin]
            part = jnp.dot(w, a, preferred_element_type=jnp.float32)
            acc = part if acc is None else acc + part
        return acc

    def bn_affine(y_masked, g_ref, b_ref):
        # Training-mode BN (biased batch stats over the M_valid real pixels),
        # folded into a single per-channel affine y*scale + shift.
        inv_m = 1.0 / M_valid
        mean = jnp.sum(y_masked, axis=1, keepdims=True) * inv_m
        # y_masked^2 == y^2 * mask (mask in {0,1}), so one product serves both.
        var = jnp.sum(y_masked * y_masked, axis=1, keepdims=True) * inv_m - mean * mean
        # TODO(synk): single-pass variance; switch to two-pass/Welford when
        #             this is tiled for real-scale activations.
        scale = g_ref[...] * lax.rsqrt(jnp.maximum(var, 0.0) + BN_EPS)
        shift = b_ref[...] - mean * scale
        return scale, shift

    mask = mask_ref[...]                                # (1, Mp): 1 at real pixels

    # Zero only the outer-halo columns of the reused scratch; the interior is
    # fully overwritten by each stage's store (pad columns re-zeroed by *mask).
    halo = jnp.zeros((s_ref.shape[0], pad), s_ref.dtype)
    s_ref[:, :pad] = halo
    s_ref[:, pad + Mp:] = halo

    # stage 1: conv1 -> bn1 -> relu            (stays in VMEM)
    y1 = conv3x3(x_ref, w1_ref) * mask
    sc1, sh1 = bn_affine(y1, g1_ref, b1_ref)
    s_ref[:, pad:pad + Mp] = jnp.maximum(y1 * sc1 + sh1, 0.0) * mask

    # stage 2: conv2 -> bn2 -> relu            (same scratch buffer, reused)
    y2 = conv3x3(s_ref, w2_ref) * mask
    sc2, sh2 = bn_affine(y2, g2_ref, b2_ref)
    s_ref[:, pad:pad + Mp] = jnp.maximum(y2 * sc2 + sh2, 0.0) * mask

    # stage 3: conv3 -> bn3 -> (+identity) -> relu, lane-dense (Cout, Mp) store
    y3 = conv3x3(s_ref, w3_ref) * mask
    sc3, sh3 = bn_affine(y3, g3_ref, b3_ref)
    res = x_ref[:, pad:pad + Mp]                        # f32 identity (zero at pads)
    o_ref[...] = jnp.maximum(y3 * sc3 + sh3 + res, 0.0)


def _fold_taps(w_oihw):
    """(Cout, Cin, 3, 3) -> (Cout, 9*Cin) bf16, K index = (kh*3 + kw)*Cin + cin."""
    cout, cin = w_oihw.shape[0], w_oihw.shape[1]
    return (jnp.transpose(w_oihw, (0, 2, 3, 1))
            .reshape(cout, 9 * cin).astype(jnp.bfloat16))


@jax.jit
def bottleneck_forward(x_nchw, params):
    """Bottleneck forward (stride=1, groups=1, dilation=1, downsample=None)."""
    N, cin, H, W = x_nchw.shape
    width = params["w1"].shape[0]
    out_ch = params["w3"].shape[0]
    assert out_ch == cin, "no-downsample Bottleneck requires planes*4 == inplanes"

    Hp, Wp = H + 2, W + 2
    Mp = N * Hp * Wp                  # interior (per-image zero-padded) columns
    pad = Wp + 1                      # outer halo: max |tap shift|
    Mt = Mp + 2 * pad
    M_valid = N * H * W               # real-pixel population for BN stats

    # Channel-major, per-image zero-padded flat layout; this single f32 copy
    # is both the conv1 source (cast to bf16 in-kernel) and the residual.
    x_p = jnp.zeros((cin, N, Hp, Wp), jnp.float32)
    x_p = x_p.at[:, :, 1:H + 1, 1:W + 1].set(
        jnp.transpose(x_nchw.astype(jnp.float32), (1, 0, 2, 3)))
    x_p = jnp.pad(x_p.reshape(cin, Mp), ((0, 0), (pad, pad)))      # (Cin, Mt)

    mask = jnp.zeros((1, N, Hp, Wp), jnp.float32)
    mask = mask.at[:, :, 1:H + 1, 1:W + 1].set(1.0)
    mask = mask.reshape(1, Mp)

    def bn_col(p):
        return p.reshape(-1, 1).astype(jnp.float32)

    inputs = [
        x_p, mask,
        _fold_taps(params["w1"]), bn_col(params["g1"]), bn_col(params["b1"]),
        _fold_taps(params["w2"]), bn_col(params["g2"]), bn_col(params["b2"]),
        _fold_taps(params["w3"]), bn_col(params["g3"]), bn_col(params["b3"]),
    ]

    kernel = functools.partial(_bottleneck_kernel, Wp=Wp, Mp=Mp, pad=pad,
                               M_valid=M_valid)
    out_p = pl.pallas_call(
        kernel,
        out_shape=jax.ShapeDtypeStruct((out_ch, Mp), jnp.float32),
        in_specs=[pl.BlockSpec(memory_space=pltpu.MemorySpace.VMEM)] * len(inputs),
        out_specs=pl.BlockSpec(memory_space=pltpu.MemorySpace.VMEM),
        scratch_shapes=[pltpu.VMEM((width, Mt), jnp.float32)],
    )(*inputs)

    # TODO(synk): in a chained ResNet, keep this channel-major padded layout
    # between blocks so these wrapper transposes/slices cancel out entirely.
    out = out_p.reshape(out_ch, N, Hp, Wp)[:, :, 1:H + 1, 1:W + 1]
    return jnp.transpose(out, (1, 0, 2, 3))


def init_bottleneck_params(key, inplanes, planes, base_width=64, groups=1):
    width = int(planes * (base_width / 64.0)) * groups
    out_ch = planes * 4  # expansion = 4
    ks = jax.random.split(key, 9)

    def conv_w(k, cout, cin):
        return 0.1 * jax.random.normal(k, (cout, cin, 3, 3), jnp.float32)

    def bn_g(k, c):
        return 1.0 + 0.1 * jax.random.normal(k, (c,), jnp.float32)

    def bn_b(k, c):
        return 0.1 * jax.random.normal(k, (c,), jnp.float32)

    return {
        "w1": conv_w(ks[0], width, inplanes),
        "g1": bn_g(ks[1], width), "b1": bn_b(ks[2], width),
        "w2": conv_w(ks[3], width, width),
        "g2": bn_g(ks[4], width), "b2": bn_b(ks[5], width),
        "w3": conv_w(ks[6], out_ch, width),
        "g3": bn_g(ks[7], out_ch), "b3": bn_b(ks[8], out_ch),
    }


# ---------------------------- pure-JAX reference ----------------------------
def _reference(x_nchw, params):
    # Convs use the same bf16-operand / f32-accumulate numerics as the kernel.
    def conv(x, w):
        return lax.conv_general_dilated(
            x.astype(jnp.bfloat16), w.astype(jnp.bfloat16),
            window_strides=(1, 1), padding=((1, 1), (1, 1)),
            dimension_numbers=("NCHW", "OIHW", "NCHW"),
            preferred_element_type=jnp.float32)

    def bn(x, g, b):
        m = jnp.mean(x, axis=(0, 2, 3), keepdims=True)
        v = jnp.mean(jnp.square(x - m), axis=(0, 2, 3), keepdims=True)
        return (x - m) * lax.rsqrt(v + BN_EPS) * g.reshape(1, -1, 1, 1) \
               + b.reshape(1, -1, 1, 1)

    out = jax.nn.relu(bn(conv(x_nchw, params["w1"]), params["g1"], params["b1"]))
    out = jax.nn.relu(bn(conv(out, params["w2"]), params["g2"], params["b2"]))
    out = bn(conv(out, params["w3"]), params["g3"], params["b3"])
    return jax.nn.relu(out + x_nchw.astype(jnp.float32))


if __name__ == "__main__":
    key = jax.random.PRNGKey(0)
    k_x, k_p = jax.random.split(key)

    inplanes, planes = 32, 8          # planes * expansion == inplanes (residual add)
    N, H, W = 2, 14, 14               # padded layout -> 2*16*16 = 512 lane-dense cols
    x = jax.random.normal(k_x, (N, inplanes, H, W), jnp.float32)
    params = init_bottleneck_params(k_p, inplanes, planes)

    out = jax.block_until_ready(bottleneck_forward(x, params))
    assert out.shape == (N, planes * 4, H, W)

    ref = jax.block_until_ready(_reference(x, params))
    err = jnp.max(jnp.abs(out - ref))
    assert jnp.allclose(out, ref, rtol=1e-2, atol=1e-2), f"max abs err = {err}"

    print("KERNEL_OK")
</pallas_src>

<mosaic_0001>
module attributes {stable_mosaic.version = 11 : i64} {
  func.func @_bottleneck_kernel(%arg0: memref<32x546xf32, #tpu.memory_space<vmem>>, %arg1: memref<1x512xf32, #tpu.memory_space<vmem>>, %arg2: memref<8x288xbf16, #tpu.memory_space<vmem>>, %arg3: memref<8x1xf32, #tpu.memory_space<vmem>>, %arg4: memref<8x1xf32, #tpu.memory_space<vmem>>, %arg5: memref<8x72xbf16, #tpu.memory_space<vmem>>, %arg6: memref<8x1xf32, #tpu.memory_space<vmem>>, %arg7: memref<8x1xf32, #tpu.memory_space<vmem>>, %arg8: memref<32x72xbf16, #tpu.memory_space<vmem>>, %arg9: memref<32x1xf32, #tpu.memory_space<vmem>>, %arg10: memref<32x1xf32, #tpu.memory_space<vmem>>, %arg11: memref<32x512xf32, #tpu.memory_space<vmem>>, %arg12: memref<8x546xf32, #tpu.memory_space<vmem>>) attributes {dimension_semantics = [], scalar_prefetch = 0 : i64, scratch_operands = 1 : i64, tpu.core_type = #tpu.core_type<tc>} {
    %c0 = arith.constant 0 : index
    %c0_0 = arith.constant 0 : index
    %0 = vector.load %arg1[%c0, %c0_0] : memref<1x512xf32, #tpu.memory_space<vmem>>, vector<1x512xf32>
    %cst = arith.constant 0.000000e+00 : f32
    %1 = vector.broadcast %cst : f32 to vector<8x17xf32>
    %c0_1 = arith.constant 0 : index
    %c0_2 = arith.constant 0 : index
    %2 = vector.load %arg12[%c0_1, %c0_2] : memref<8x546xf32, #tpu.memory_space<vmem>>, vector<8x17xf32>
    tpu.vector_store %arg12[%c0_1, %c0_2], %1 {strides = array<i32>} : memref<8x546xf32, #tpu.memory_space<vmem>>, vector<8x17xf32>,
    %c0_3 = arith.constant 0 : index
    %c529 = arith.constant 529 : index
    %3 = vector.load %arg12[%c0_3, %c529] : memref<8x546xf32, #tpu.memory_space<vmem>>, vector<8x17xf32>
    tpu.vector_store %arg12[%c0_3, %c529], %1 {strides = array<i32>} : memref<8x546xf32, #tpu.memory_space<vmem>>, vector<8x17xf32>,
    %c0_4 = arith.constant 0 : index
    %c0_5 = arith.constant 0 : index
    %4 = vector.load %arg0[%c0_4, %c0_5] : memref<32x546xf32, #tpu.memory_space<vmem>>, vector<32x512xf32>
    %c0_6 = arith.constant 0 : index
    %c1 = arith.constant 1 : index
    %5 = vector.load %arg0[%c0_6, %c1] : memref<32x546xf32, #tpu.memory_space<vmem>>, vector<32x512xf32>
    %c0_7 = arith.constant 0 : index
    %c2 = arith.constant 2 : index
    %6 = vector.load %arg0[%c0_7, %c2] : memref<32x546xf32, #tpu.memory_space<vmem>>, vector<32x512xf32>
    %7 = tpu.concatenate %4, %5, %6 in 0 : vector<32x512xf32>, vector<32x512xf32>, vector<32x512xf32> -> vector<96x512xf32>
    %8 = arith.truncf %7 : vector<96x512xf32> to vector<96x512xbf16>
    %c0_8 = arith.constant 0 : index
    %c0_9 = arith.constant 0 : index
    %9 = vector.load %arg2[%c0_8, %c0_9] : memref<8x288xbf16, #tpu.memory_space<vmem>>, vector<8x96xbf16>
    %cst_10 = arith.constant dense<0.000000e+00> : vector<8x512xf32>
    %10 = tpu.matmul %9, %8, %cst_10 {dimension_numbers = #tpu.dot_dimension_numbers<[1], [0], [0], [1], [0, 0, 1, 1], [], []>} : vector<8x96xbf16>, vector<96x512xbf16>, vector<8x512xf32> -> vector<8x512xf32>
    %c0_11 = arith.constant 0 : index
    %c16 = arith.constant 16 : index
    %11 = vector.load %arg0[%c0_11, %c16] : memref<32x546xf32, #tpu.memory_space<vmem>>, vector<32x512xf32>
    %c0_12 = arith.constant 0 : index
    %c17 = arith.constant 17 : index
    %12 = vector.load %arg0[%c0_12, %c17] : memref<32x546xf32, #tpu.memory_space<vmem>>, vector<32x512xf32>
    %c0_13 = arith.constant 0 : index
    %c18 = arith.constant 18 : index
    %13 = vector.load %arg0[%c0_13, %c18] : memref<32x546xf32, #tpu.memory_space<vmem>>, vector<32x512xf32>
    %14 = tpu.concatenate %11, %12, %13 in 0 : vector<32x512xf32>, vector<32x512xf32>, vector<32x512xf32> -> vector<96x512xf32>
    %15 = arith.truncf %14 : vector<96x512xf32> to vector<96x512xbf16>
    %c0_14 = arith.constant 0 : index
    %c96 = arith.constant 96 : index
    %16 = vector.load %arg2[%c0_14, %c96] : memref<8x288xbf16, #tpu.memory_space<vmem>>, vector<8x96xbf16>
    %cst_15 = arith.constant dense<0.000000e+00> : vector<8x512xf32>
    %17 = tpu.matmul %16, %15, %cst_15 {dimension_numbers = #tpu.dot_dimension_numbers<[1], [0], [0], [1], [0, 0, 1, 1], [], []>} : vector<8x96xbf16>, vector<96x512xbf16>, vector<8x512xf32> -> vector<8x512xf32>
    %18 = arith.addf %10, %17 : vector<8x512xf32>
    %c0_16 = arith.constant 0 : index
    %c32 = arith.constant 32 : index
    %19 = vector.load %arg0[%c0_16, %c32] : memref<32x546xf32, #tpu.memory_space<vmem>>, vector<32x512xf32>
    %c0_17 = arith.constant 0 : index
    %c33 = arith.constant 33 : index
    %20 = vector.load %arg0[%c0_17, %c33] : memref<32x546xf32, #tpu.memory_space<vmem>>, vector<32x512xf32>
    %c0_18 = arith.constant 0 : index
    %c34 = arith.constant 34 : index
    %21 = vector.load %arg0[%c0_18, %c34] : memref<32x546xf32, #tpu.memory_space<vmem>>, vector<32x512xf32>
    %22 = tpu.concatenate %19, %20, %21 in 0 : vector<32x512xf32>, vector<32x512xf32>, vector<32x512xf32> -> vector<96x512xf32>
    %23 = arith.truncf %22 : vector<96x512xf32> to vector<96x512xbf16>
    %c0_19 = arith.constant 0 : index
    %c192 = arith.constant 192 : index
    %24 = vector.load %arg2[%c0_19, %c192] : memref<8x288xbf16, #tpu.memory_space<vmem>>, vector<8x96xbf16>
    %cst_20 = arith.constant dense<0.000000e+00> : vector<8x512xf32>
    %25 = tpu.matmul %24, %23, %cst_20 {dimension_numbers = #tpu.dot_dimension_numbers<[1], [0], [0], [1], [0, 0, 1, 1], [], []>} : vector<8x96xbf16>, vector<96x512xbf16>, vector<8x512xf32> -> vector<8x512xf32>
    %26 = arith.addf %18, %25 : vector<8x512xf32>
    %27 = vector.broadcast %0 : vector<1x512xf32> to vector<8x512xf32>
    %28 = arith.mulf %26, %27 : vector<8x512xf32>
    %cst_21 = arith.constant dense<0.000000e+00> : vector<8xf32>
    %29 = vector.multi_reduction <add>, %28, %cst_21 [1] : vector<8x512xf32> to vector<8xf32>
    %30 = vector.shape_cast %29 : vector<8xf32> to vector<8x1xf32>
    %cst_22 = arith.constant 0.00255102036 : f32
    %31 = vector.broadcast %cst_22 : f32 to vector<8x1xf32>
    %32 = arith.mulf %30, %31 : vector<8x1xf32>
    %33 = arith.mulf %28, %28 : vector<8x512xf32>
    %cst_23 = arith.constant dense<0.000000e+00> : vector<8xf32>
    %34 = vector.multi_reduction <add>, %33, %cst_23 [1] : vector<8x512xf32> to vector<8xf32>
    %35 = vector.shape_cast %34 : vector<8xf32> to vector<8x1xf32>
    %cst_24 = arith.constant 0.00255102036 : f32
    %36 = vector.broadcast %cst_24 : f32 to vector<8x1xf32>
    %37 = arith.mulf %35, %36 : vector<8x1xf32>
    %38 = arith.mulf %32, %32 : vector<8x1xf32>
    %39 = arith.subf %37, %38 : vector<8x1xf32>
    %c0_25 = arith.constant 0 : index
    %c0_26 = arith.constant 0 : index
    %40 = vector.load %arg3[%c0_25, %c0_26] : memref<8x1xf32, #tpu.memory_space<vmem>>, vector<8x1xf32>
    %cst_27 = arith.constant 0.000000e+00 : f32
    %41 = vector.broadcast %cst_27 : f32 to vector<8x1xf32>
    %42 = arith.maximumf %39, %41 : vector<8x1xf32>
    %cst_28 = arith.constant 9.99999974E-6 : f32
    %43 = vector.broadcast %cst_28 : f32 to vector<8x1xf32>
    %44 = arith.addf %42, %43 : vector<8x1xf32>
    %45 = math.rsqrt %44 : vector<8x1xf32>
    %46 = arith.mulf %40, %45 : vector<8x1xf32>
    %c0_29 = arith.constant 0 : index
    %c0_30 = arith.constant 0 : index
    %47 = vector.load %arg4[%c0_29, %c0_30] : memref<8x1xf32, #tpu.memory_space<vmem>>, vector<8x1xf32>
    %48 = arith.mulf %32, %46 : vector<8x1xf32>
    %49 = arith.subf %47, %48 : vector<8x1xf32>
    %50 = vector.broadcast %46 : vector<8x1xf32> to vector<8x512xf32>
    %51 = arith.mulf %28, %50 : vector<8x512xf32>
    %52 = vector.broadcast %49 : vector<8x1xf32> to vector<8x512xf32>
    %53 = arith.addf %51, %52 : vector<8x512xf32>
    %cst_31 = arith.constant 0.000000e+00 : f32
    %54 = vector.broadcast %cst_31 : f32 to vector<8x512xf32>
    %55 = arith.maximumf %53, %54 : vector<8x512xf32>
    %56 = vector.broadcast %0 : vector<1x512xf32> to vector<8x512xf32>
    %57 = arith.mulf %55, %56 : vector<8x512xf32>
    %c0_32 = arith.constant 0 : index
    %c17_33 = arith.constant 17 : index
    %58 = vector.load %arg12[%c0_32, %c17_33] : memref<8x546xf32, #tpu.memory_space<vmem>>, vector<8x512xf32>
    tpu.vector_store %arg12[%c0_32, %c17_33], %57 {strides = array<i32>} : memref<8x546xf32, #tpu.memory_space<vmem>>, vector<8x512xf32>,
    %c0_34 = arith.constant 0 : index
    %c0_35 = arith.constant 0 : index
    %59 = vector.load %arg12[%c0_34, %c0_35] : memref<8x546xf32, #tpu.memory_space<vmem>>, vector<8x512xf32>
    %c0_36 = arith.constant 0 : index
    %c1_37 = arith.constant 1 : index
    %60 = vector.load %arg12[%c0_36, %c1_37] : memref<8x546xf32, #tpu.memory_space<vmem>>, vector<8x512xf32>
    %c0_38 = arith.constant 0 : index
    %c2_39 = arith.constant 2 : index
    %61 = vector.load %arg12[%c0_38, %c2_39] : memref<8x546xf32, #tpu.memory_space<vmem>>, vector<8x512xf32>
    %c0_40 = arith.constant 0 : index
    %c16_41 = arith.constant 16 : index
    %62 = vector.load %arg12[%c0_40, %c16_41] : memref<8x546xf32, #tpu.memory_space<vmem>>, vector<8x512xf32>
    %c0_42 = arith.constant 0 : index
    %c17_43 = arith.constant 17 : index
    %63 = vector.load %arg12[%c0_42, %c17_43] : memref<8x546xf32, #tpu.memory_space<vmem>>, vector<8x512xf32>
    %c0_44 = arith.constant 0 : index
    %c18_45 = arith.constant 18 : index
    %64 = vector.load %arg12[%c0_44, %c18_45] : memref<8x546xf32, #tpu.memory_space<vmem>>, vector<8x512xf32>
    %c0_46 = arith.constant 0 : index
    %c32_47 = arith.constant 32 : index
    %65 = vector.load %arg12[%c0_46, %c32_47] : memref<8x546xf32, #tpu.memory_space<vmem>>, vector<8x512xf32>
    %c0_48 = arith.constant 0 : index
    %c33_49 = arith.constant 33 : index
    %66 = vector.load %arg12[%c0_48, %c33_49] : memref<8x546xf32, #tpu.memory_space<vmem>>, vector<8x512xf32>
    %c0_50 = arith.constant 0 : index
    %c34_51 = arith.constant 34 : index
    %67 = vector.load %arg12[%c0_50, %c34_51] : memref<8x546xf32, #tpu.memory_space<vmem>>, vector<8x512xf32>
    %68 = tpu.concatenate %59, %60, %61, %62, %63, %64, %65, %66, %67 in 0 : vector<8x512xf32>, vector<8x512xf32>, vector<8x512xf32>, vector<8x512xf32>, vector<8x512xf32>, vector<8x512xf32>, vector<8x512xf32>, vector<8x512xf32>, vector<8x512xf32> -> vector<72x512xf32>
    %69 = arith.truncf %68 : vector<72x512xf32> to vector<72x512xbf16>
    %c0_52 = arith.constant 0 : index
    %c0_53 = arith.constant 0 : index
    %70 = vector.load %arg5[%c0_52, %c0_53] : memref<8x72xbf16, #tpu.memory_space<vmem>>, vector<8x72xbf16>
    %cst_54 = arith.constant dense<0.000000e+00> : vector<8x512xf32>
    %71 = tpu.matmul %70, %69, %cst_54 {dimension_numbers = #tpu.dot_dimension_numbers<[1], [0], [0], [1], [0, 0, 1, 1], [], []>} : vector<8x72xbf16>, vector<72x512xbf16>, vector<8x512xf32> -> vector<8x512xf32>
    %72 = vector.broadcast %0 : vector<1x512xf32> to vector<8x512xf32>
    %73 = arith.mulf %71, %72 : vector<8x512xf32>
    %cst_55 = arith.constant dense<0.000000e+00> : vector<8xf32>
    %74 = vector.multi_reduction <add>, %73, %cst_55 [1] : vector<8x512xf32> to vector<8xf32>
    %75 = vector.shape_cast %74 : vector<8xf32> to vector<8x1xf32>
    %cst_56 = arith.constant 0.00255102036 : f32
    %76 = vector.broadcast %cst_56 : f32 to vector<8x1xf32>
    %77 = arith.mulf %75, %76 : vector<8x1xf32>
    %78 = arith.mulf %73, %73 : vector<8x512xf32>
    %cst_57 = arith.constant dense<0.000000e+00> : vector<8xf32>
    %79 = vector.multi_reduction <add>, %78, %cst_57 [1] : vector<8x512xf32> to vector<8xf32>
    %80 = vector.shape_cast %79 : vector<8xf32> to vector<8x1xf32>
    %cst_58 = arith.constant 0.00255102036 : f32
    %81 = vector.broadcast %cst_58 : f32 to vector<8x1xf32>
    %82 = arith.mulf %80, %81 : vector<8x1xf32>
    %83 = arith.mulf %77, %77 : vector<8x1xf32>
    %84 = arith.subf %82, %83 : vector<8x1xf32>
    %c0_59 = arith.constant 0 : index
    %c0_60 = arith.constant 0 : index
    %85 = vector.load %arg6[%c0_59, %c0_60] : memref<8x1xf32, #tpu.memory_space<vmem>>, vector<8x1xf32>
    %cst_61 = arith.constant 0.000000e+00 : f32
    %86 = vector.broadcast %cst_61 : f32 to vector<8x1xf32>
    %87 = arith.maximumf %84, %86 : vector<8x1xf32>
    %cst_62 = arith.constant 9.99999974E-6 : f32
    %88 = vector.broadcast %cst_62 : f32 to vector<8x1xf32>
    %89 = arith.addf %87, %88 : vector<8x1xf32>
    %90 = math.rsqrt %89 : vector<8x1xf32>
    %91 = arith.mulf %85, %90 : vector<8x1xf32>
    %c0_63 = arith.constant 0 : index
    %c0_64 = arith.constant 0 : index
    %92 = vector.load %arg7[%c0_63, %c0_64] : memref<8x1xf32, #tpu.memory_space<vmem>>, vector<8x1xf32>
    %93 = arith.mulf %77, %91 : vector<8x1xf32>
    %94 = arith.subf %92, %93 : vector<8x1xf32>
    %95 = vector.broadcast %91 : vector<8x1xf32> to vector<8x512xf32>
    %96 = arith.mulf %73, %95 : vector<8x512xf32>
    %97 = vector.broadcast %94 : vector<8x1xf32> to vector<8x512xf32>
    %98 = arith.addf %96, %97 : vector<8x512xf32>
    %cst_65 = arith.constant 0.000000e+00 : f32
    %99 = vector.broadcast %cst_65 : f32 to vector<8x512xf32>
    %100 = arith.maximumf %98, %99 : vector<8x512xf32>
    %101 = vector.broadcast %0 : vector<1x512xf32> to vector<8x512xf32>
    %102 = arith.mulf %100, %101 : vector<8x512xf32>
    %c0_66 = arith.constant 0 : index
    %c17_67 = arith.constant 17 : index
    %103 = vector.load %arg12[%c0_66, %c17_67] : memref<8x546xf32, #tpu.memory_space<vmem>>, vector<8x512xf32>
    tpu.vector_store %arg12[%c0_66, %c17_67], %102 {strides = array<i32>} : memref<8x546xf32, #tpu.memory_space<vmem>>, vector<8x512xf32>,
    %c0_68 = arith.constant 0 : index
    %c0_69 = arith.constant 0 : index
    %104 = vector.load %arg12[%c0_68, %c0_69] : memref<8x546xf32, #tpu.memory_space<vmem>>, vector<8x512xf32>
    %c0_70 = arith.constant 0 : index
    %c1_71 = arith.constant 1 : index
    %105 = vector.load %arg12[%c0_70, %c1_71] : memref<8x546xf32, #tpu.memory_space<vmem>>, vector<8x512xf32>
    %c0_72 = arith.constant 0 : index
    %c2_73 = arith.constant 2 : index
    %106 = vector.load %arg12[%c0_72, %c2_73] : memref<8x546xf32, #tpu.memory_space<vmem>>, vector<8x512xf32>
    %c0_74 = arith.constant 0 : index
    %c16_75 = arith.constant 16 : index
    %107 = vector.load %arg12[%c0_74, %c16_75] : memref<8x546xf32, #tpu.memory_space<vmem>>, vector<8x512xf32>
    %c0_76 = arith.constant 0 : index
    %c17_77 = arith.constant 17 : index
    %108 = vector.load %arg12[%c0_76, %c17_77] : memref<8x546xf32, #tpu.memory_space<vmem>>, vector<8x512xf32>
    %c0_78 = arith.constant 0 : index
    %c18_79 = arith.constant 18 : index
    %109 = vector.load %arg12[%c0_78, %c18_79] : memref<8x546xf32, #tpu.memory_space<vmem>>, vector<8x512xf32>
    %c0_80 = arith.constant 0 : index
    %c32_81 = arith.constant 32 : index
    %110 = vector.load %arg12[%c0_80, %c32_81] : memref<8x546xf32, #tpu.memory_space<vmem>>, vector<8x512xf32>
    %c0_82 = arith.constant 0 : index
    %c33_83 = arith.constant 33 : index
    %111 = vector.load %arg12[%c0_82, %c33_83] : memref<8x546xf32, #tpu.memory_space<vmem>>, vector<8x512xf32>
    %c0_84 = arith.constant 0 : index
    %c34_85 = arith.constant 34 : index
    %112 = vector.load %arg12[%c0_84, %c34_85] : memref<8x546xf32, #tpu.memory_space<vmem>>, vector<8x512xf32>
    %113 = tpu.concatenate %104, %105, %106, %107, %108, %109, %110, %111, %112 in 0 : vector<8x512xf32>, vector<8x512xf32>, vector<8x512xf32>, vector<8x512xf32>, vector<8x512xf32>, vector<8x512xf32>, vector<8x512xf32>, vector<8x512xf32>, vector<8x512xf32> -> vector<72x512xf32>
    %114 = arith.truncf %113 : vector<72x512xf32> to vector<72x512xbf16>
    %c0_86 = arith.constant 0 : index
    %c0_87 = arith.constant 0 : index
    %115 = vector.load %arg8[%c0_86, %c0_87] : memref<32x72xbf16, #tpu.memory_space<vmem>>, vector<32x72xbf16>
    %cst_88 = arith.constant dense<0.000000e+00> : vector<32x512xf32>
    %116 = tpu.matmul %115, %114, %cst_88 {dimension_numbers = #tpu.dot_dimension_numbers<[1], [0], [0], [1], [0, 0, 1, 1], [], []>} : vector<32x72xbf16>, vector<72x512xbf16>, vector<32x512xf32> -> vector<32x512xf32>
    %117 = vector.broadcast %0 : vector<1x512xf32> to vector<32x512xf32>
    %118 = arith.mulf %116, %117 : vector<32x512xf32>
    %cst_89 = arith.constant dense<0.000000e+00> : vector<32xf32>
    %119 = vector.multi_reduction <add>, %118, %cst_89 [1] : vector<32x512xf32> to vector<32xf32>
    %120 = vector.shape_cast %119 : vector<32xf32> to vector<32x1xf32>
    %cst_90 = arith.constant 0.00255102036 : f32
    %121 = vector.broadcast %cst_90 : f32 to vector<32x1xf32>
    %122 = arith.mulf %120, %121 : vector<32x1xf32>
    %123 = arith.mulf %118, %118 : vector<32x512xf32>
    %cst_91 = arith.constant dense<0.000000e+00> : vector<32xf32>
    %124 = vector.multi_reduction <add>, %123, %cst_91 [1] : vector<32x512xf32> to vector<32xf32>
    %125 = vector.shape_cast %124 : vector<32xf32> to vector<32x1xf32>
    %cst_92 = arith.constant 0.00255102036 : f32
    %126 = vector.broadcast %cst_92 : f32 to vector<32x1xf32>
    %127 = arith.mulf %125, %126 : vector<32x1xf32>
    %128 = arith.mulf %122, %122 : vector<32x1xf32>
    %129 = arith.subf %127, %128 : vector<32x1xf32>
    %c0_93 = arith.constant 0 : index
    %c0_94 = arith.constant 0 : index
    %130 = vector.load %arg9[%c0_93, %c0_94] : memref<32x1xf32, #tpu.memory_space<vmem>>, vector<32x1xf32>
    %cst_95 = arith.constant 0.000000e+00 : f32
    %131 = vector.broadcast %cst_95 : f32 to vector<32x1xf32>
    %132 = arith.maximumf %129, %131 : vector<32x1xf32>
    %cst_96 = arith.constant 9.99999974E-6 : f32
    %133 = vector.broadcast %cst_96 : f32 to vector<32x1xf32>
    %134 = arith.addf %132, %133 : vector<32x1xf32>
    %135 = math.rsqrt %134 : vector<32x1xf32>
    %136 = arith.mulf %130, %135 : vector<32x1xf32>
    %c0_97 = arith.constant 0 : index
    %c0_98 = arith.constant 0 : index
    %137 = vector.load %arg10[%c0_97, %c0_98] : memref<32x1xf32, #tpu.memory_space<vmem>>, vector<32x1xf32>
    %138 = arith.mulf %122, %136 : vector<32x1xf32>
    %139 = arith.subf %137, %138 : vector<32x1xf32>
    %c0_99 = arith.constant 0 : index
    %c17_100 = arith.constant 17 : index
    %140 = vector.load %arg0[%c0_99, %c17_100] : memref<32x546xf32, #tpu.memory_space<vmem>>, vector<32x512xf32>
    %141 = vector.broadcast %136 : vector<32x1xf32> to vector<32x512xf32>
    %142 = arith.mulf %118, %141 : vector<32x512xf32>
    %143 = vector.broadcast %139 : vector<32x1xf32> to vector<32x512xf32>
    %144 = arith.addf %142, %143 : vector<32x512xf32>
    %145 = arith.addf %144, %140 : vector<32x512xf32>
    %cst_101 = arith.constant 0.000000e+00 : f32
    %146 = vector.broadcast %cst_101 : f32 to vector<32x512xf32>
    %147 = arith.maximumf %145, %146 : vector<32x512xf32>
    %c0_102 = arith.constant 0 : index
    %c0_103 = arith.constant 0 : index
    %148 = vector.load %arg11[%c0_102, %c0_103] : memref<32x512xf32, #tpu.memory_space<vmem>>, vector<32x512xf32>
    tpu.vector_store %arg11[%c0_102, %c0_103], %147 {strides = array<i32>} : memref<32x512xf32, #tpu.memory_space<vmem>>, vector<32x512xf32>,
    return
  }
}

</mosaic_0001>

<llo_original>
// kernel: bottleneck_forward.1
$region0: #{bottleneck_forward.1}
  #allocation0 [shape = 'u32[]', space=smem, size = 0x4, offset = 0x4, fixed_abs, tag = 'smem constant byte address 0x4 - core index']
  #allocation1 [shape = 'u32[72,128]{1,0:T(1,128)}', space=vmem, size = 0x9000, scoped, tag = 'internal scratch']
  #allocation2 [shape = 'f32[8,546]{1,0:T(8,128)}', space=vmem, size = 0x5000, scoped, tag = 'scratch operand']
  %s0 = inlined_call_operand.vmem [shape: f32[32,546], index: 0, kind: input, shape index: {}]
  %s1 = inlined_call_operand.vmem [shape: f32[1,512], index: 1, kind: input, shape index: {}]
  %s2 = inlined_call_operand.vmem [shape: bf16[8,288], index: 2, kind: input, shape index: {}]
  %s3 = inlined_call_operand.vmem [shape: f32[8,1], index: 3, kind: input, shape index: {}]
  %s4 = inlined_call_operand.vmem [shape: f32[8,1], index: 4, kind: input, shape index: {}]
  %s5 = inlined_call_operand.vmem [shape: bf16[8,72], index: 5, kind: input, shape index: {}]
  %s6 = inlined_call_operand.vmem [shape: f32[8,1], index: 6, kind: input, shape index: {}]
  %s7 = inlined_call_operand.vmem [shape: f32[8,1], index: 7, kind: input, shape index: {}]
  %s8 = inlined_call_operand.vmem [shape: bf16[32,72], index: 8, kind: input, shape index: {}]
  %s9 = inlined_call_operand.vmem [shape: f32[32,1], index: 9, kind: input, shape index: {}]
  %s10 = inlined_call_operand.vmem [shape: f32[32,1], index: 10, kind: input, shape index: {}]
  %s11 = inlined_call_operand.vmem [shape: f32[32,512], index: 11, kind: output, shape index: {}]
  %s12 = sld [smem:[#allocation0]]
  $region54: #{bottleneck_forward.1} parent=0
    _
  %s14 = ssub.s32 1, %s12
  %s15 = scalar_select 0, %s14, %s12
  // Predicated region
  $region2: #{bottleneck_forward.1} parent=0 // pred_check
    _
  $region3: #{bottleneck_forward.1} parent=0 // pred_check_branch
    %17 = sbr.rel (0) target = $region5
  $region4: #{bottleneck_forward.1} parent=0 // pred_region
    _
  $region5: #{bottleneck_forward.1} parent=0 // pred_fallthru
    _
  // Predicated region
  $region6: #{bottleneck_forward.1} parent=0 // pred_check
    _
  $region7: #{bottleneck_forward.1} parent=0 // pred_check_branch
    %19 = sbr.rel (0) target = $region9
  $region8: #{bottleneck_forward.1} parent=0 // pred_region
    _
  $region9: #{bottleneck_forward.1} parent=0 // pred_fallthru
    _
  // Predicated region
  $region10: #{bottleneck_forward.1} parent=0 // pred_check
    _
  $region11: #{bottleneck_forward.1} parent=0 // pred_check_branch
    %21 = sbr.rel (0) target = $region13
  $region12: #{bottleneck_forward.1} parent=0 // pred_region
    _
  $region13: #{bottleneck_forward.1} parent=0 // pred_fallthru
    _
  // Predicated region
  $region14: #{bottleneck_forward.1} parent=0 // pred_check
    _
  $region15: #{bottleneck_forward.1} parent=0 // pred_check_branch
    %23 = sbr.rel (0) target = $region17
  $region16: #{bottleneck_forward.1} parent=0 // pred_region
    _
  $region17: #{bottleneck_forward.1} parent=0 // pred_fallthru
    _
  // Predicated region
  $region18: #{bottleneck_forward.1} parent=0 // pred_check
    _
  $region19: #{bottleneck_forward.1} parent=0 // pred_check_branch
    %25 = sbr.rel (0) target = $region21
  $region20: #{bottleneck_forward.1} parent=0 // pred_region
    _
  $region21: #{bottleneck_forward.1} parent=0 // pred_fallthru
    _
  // Predicated region
  $region22: #{bottleneck_forward.1} parent=0 // pred_check
    _
  $region23: #{bottleneck_forward.1} parent=0 // pred_check_branch
    %27 = sbr.rel (0) target = $region25
  $region24: #{bottleneck_forward.1} parent=0 // pred_region
    _
  $region25: #{bottleneck_forward.1} parent=0 // pred_fallthru
    _
  // Predicated region
  $region26: #{bottleneck_forward.1} parent=0 // pred_check
    _
  $region27: #{bottleneck_forward.1} parent=0 // pred_check_branch
    %29 = sbr.rel (0) target = $region29
  $region28: #{bottleneck_forward.1} parent=0 // pred_region
    _
  $region29: #{bottleneck_forward.1} parent=0 // pred_fallthru
    _
  // Predicated region
  $region30: #{bottleneck_forward.1} parent=0 // pred_check
    _
  $region31: #{bottleneck_forward.1} parent=0 // pred_check_branch
    %31 = sbr.rel (0) target = $region33
  $region32: #{bottleneck_forward.1} parent=0 // pred_region
    _
  $region33: #{bottleneck_forward.1} parent=0 // pred_fallthru
    _
  // Predicated region
  $region34: #{bottleneck_forward.1} parent=0 // pred_check
    _
  $region35: #{bottleneck_forward.1} parent=0 // pred_check_branch
    %33 = sbr.rel (0) target = $region37
  $region36: #{bottleneck_forward.1} parent=0 // pred_region
    _
  $region37: #{bottleneck_forward.1} parent=0 // pred_fallthru
    _
  // Predicated region
  $region38: #{bottleneck_forward.1} parent=0 // pred_check
    _
  $region39: #{bottleneck_forward.1} parent=0 // pred_check_branch
    %35 = sbr.rel (0) target = $region41
  $region40: #{bottleneck_forward.1} parent=0 // pred_region
    _
  $region41: #{bottleneck_forward.1} parent=0 // pred_fallthru
    _
  // Predicated region
  $region42: #{bottleneck_forward.1} parent=0 // pred_check
    _
  $region43: #{bottleneck_forward.1} parent=0 // pred_check_branch
    %37 = sbr.rel (0) target = $region45
  $region44: #{bottleneck_forward.1} parent=0 // pred_region
    _
  $region45: #{bottleneck_forward.1} parent=0 // pred_fallthru
    _
  %v39 = vld [vmem:[%s1] sm:$0xf]
  %vm40 = vcmask 138240
  %41 = vst.msk [vmem:[#allocation2] sm:$0xff] %vm40, 0.0
  %vm42 = vcmask 277640
  %43 = vst.msk [vmem:[#allocation2 + $0x20] sm:$0xff] %vm42, 0.0
  %v44 = vld [vmem:[%s0] sm:$0xff]
  %v45 = vld [vmem:[%s0 + $0x8] sm:$0xff]
  %v46 = vld [vmem:[%s0 + $0x10] sm:$0xff]
  %v47 = vld [vmem:[%s0 + $0x18] sm:$0xff]
  %v48 = vld [vmem:[%s0 + $0x28] sm:$0xff]
  %v49 = vld [vmem:[%s0 + $0x30] sm:$0xff]
  %v50 = vld [vmem:[%s0 + $0x38] sm:$0xff]
  %v51 = vld [vmem:[%s0 + $0x40] sm:$0xff]
  %v52 = vld [vmem:[%s0 + $0x50] sm:$0xff]
  %v53 = vld [vmem:[%s0 + $0x58] sm:$0xff]
  %v54 = vld [vmem:[%s0 + $0x60] sm:$0xff]
  %v55 = vld [vmem:[%s0 + $0x68] sm:$0xff]
  %v56 = vld [vmem:[%s0 + $0x78] sm:$0xff]
  %v57 = vld [vmem:[%s0 + $0x80] sm:$0xff]
  %v58 = vld [vmem:[%s0 + $0x88] sm:$0xff]
  %v59 = vld [vmem:[%s0 + $0x90] sm:$0xff]
  %v60 = vld [vmem:[%s0 + $0x20] sm:$0xff]
  %v61 = vld [vmem:[%s0 + $0x48] sm:$0xff]
  %v62 = vld [vmem:[%s0 + $0x70] sm:$0xff]
  %v63 = vld [vmem:[%s0 + $0x98] sm:$0xff]
  %84 = vrot.lane.b32.xlu0 %v44, 127
  %v85 = vpop.permute.xlu0 %84
  %86 = vrot.lane.b32.xlu0 %v45, 127
  %v87 = vpop.permute.xlu0 %86
  %88 = vrot.lane.b32.xlu0 %v46, 127
  %v89 = vpop.permute.xlu0 %88
  %90 = vrot.lane.b32.xlu0 %v47, 127
  %v91 = vpop.permute.xlu0 %90
  %92 = vrot.lane.b32.xlu0 %v60, 127
  %v93 = vpop.permute.xlu0 %92
  %94 = vrot.lane.b32.xlu0 %v48, 127
  %v95 = vpop.permute.xlu0 %94
  %96 = vrot.lane.b32.xlu0 %v49, 127
  %v97 = vpop.permute.xlu0 %96
  %98 = vrot.lane.b32.xlu0 %v50, 127
  %v99 = vpop.permute.xlu0 %98
  %100 = vrot.lane.b32.xlu0 %v51, 127
  %v101 = vpop.permute.xlu0 %100
  %102 = vrot.lane.b32.xlu0 %v61, 127
  %v103 = vpop.permute.xlu0 %102
  %104 = vrot.lane.b32.xlu0 %v52, 127
  %v105 = vpop.permute.xlu0 %104
  %106 = vrot.lane.b32.xlu0 %v53, 127
  %v107 = vpop.permute.xlu0 %106
  %108 = vrot.lane.b32.xlu0 %v54, 127
  %v109 = vpop.permute.xlu0 %108
  %110 = vrot.lane.b32.xlu0 %v55, 127
  %v111 = vpop.permute.xlu0 %110
  %112 = vrot.lane.b32.xlu0 %v62, 127
  %v113 = vpop.permute.xlu0 %112
  %114 = vrot.lane.b32.xlu0 %v56, 127
  %v115 = vpop.permute.xlu0 %114
  %116 = vrot.lane.b32.xlu0 %v57, 127
  %v117 = vpop.permute.xlu0 %116
  %118 = vrot.lane.b32.xlu0 %v58, 127
  %v119 = vpop.permute.xlu0 %118
  %120 = vrot.lane.b32.xlu0 %v59, 127
  %v121 = vpop.permute.xlu0 %120
  %122 = vrot.lane.b32.xlu0 %v63, 127
  %v123 = vpop.permute.xlu0 %122
  %vm124 = vcmask 1039360
  %v125 = vsel %vm124, %v85, %v87
  %v126 = vsel %vm124, %v87, %v89
  %v127 = vsel %vm124, %v89, %v91
  %v128 = vsel %vm124, %v91, %v93
  %v129 = vsel %vm124, %v95, %v97
  %v130 = vsel %vm124, %v97, %v99
  %v131 = vsel %vm124, %v99, %v101
  %v132 = vsel %vm124, %v101, %v103
  %v133 = vsel %vm124, %v105, %v107
  %v134 = vsel %vm124, %v107, %v109
  %v135 = vsel %vm124, %v109, %v111
  %v136 = vsel %vm124, %v111, %v113
  %v137 = vsel %vm124, %v115, %v117
  %v138 = vsel %vm124, %v117, %v119
  %v139 = vsel %vm124, %v119, %v121
  %v140 = vsel %vm124, %v121, %v123
  %157 = vrot.lane.b32.xlu0 %v44, 126
  %v158 = vpop.permute.xlu0 %157
  %159 = vrot.lane.b32.xlu0 %v45, 126
  %v160 = vpop.permute.xlu0 %159
  %161 = vrot.lane.b32.xlu0 %v46, 126
  %v162 = vpop.permute.xlu0 %161
  %163 = vrot.lane.b32.xlu0 %v47, 126
  %v164 = vpop.permute.xlu0 %163
  %165 = vrot.lane.b32.xlu0 %v60, 126
  %v166 = vpop.permute.xlu0 %165
  %167 = vrot.lane.b32.xlu0 %v48, 126
  %v168 = vpop.permute.xlu0 %167
  %169 = vrot.lane.b32.xlu0 %v49, 126
  %v170 = vpop.permute.xlu0 %169
  %171 = vrot.lane.b32.xlu0 %v50, 126
  %v172 = vpop.permute.xlu0 %171
  %173 = vrot.lane.b32.xlu0 %v51, 126
  %v174 = vpop.permute.xlu0 %173
  %175 = vrot.lane.b32.xlu0 %v61, 126
  %v176 = vpop.permute.xlu0 %175
  %177 = vrot.lane.b32.xlu0 %v52, 126
  %v178 = vpop.permute.xlu0 %177
  %179 = vrot.lane.b32.xlu0 %v53, 126
  %v180 = vpop.permute.xlu0 %179
  %181 = vrot.lane.b32.xlu0 %v54, 126
  %v182 = vpop.permute.xlu0 %181
  %183 = vrot.lane.b32.xlu0 %v55, 126
  %v184 = vpop.permute.xlu0 %183
  %185 = vrot.lane.b32.xlu0 %v62, 126
  %v186 = vpop.permute.xlu0 %185
  %187 = vrot.lane.b32.xlu0 %v56, 126
  %v188 = vpop.permute.xlu0 %187
  %189 = vrot.lane.b32.xlu0 %v57, 126
  %v190 = vpop.permute.xlu0 %189
  %191 = vrot.lane.b32.xlu0 %v58, 126
  %v192 = vpop.permute.xlu0 %191
  %193 = vrot.lane.b32.xlu0 %v59, 126
  %v194 = vpop.permute.xlu0 %193
  %195 = vrot.lane.b32.xlu0 %v63, 126
  %v196 = vpop.permute.xlu0 %195
  %vm197 = vcmask 1031168
  %v198 = vsel %vm197, %v158, %v160
  %v199 = vsel %vm197, %v160, %v162
  %v200 = vsel %vm197, %v162, %v164
  %v201 = vsel %vm197, %v164, %v166
  %v202 = vsel %vm197, %v168, %v170
  %v203 = vsel %vm197, %v170, %v172
  %v204 = vsel %vm197, %v172, %v174
  %v205 = vsel %vm197, %v174, %v176
  %v206 = vsel %vm197, %v178, %v180
  %v207 = vsel %vm197, %v180, %v182
  %v208 = vsel %vm197, %v182, %v184
  %v209 = vsel %vm197, %v184, %v186
  %v210 = vsel %vm197, %v188, %v190
  %v211 = vsel %vm197, %v190, %v192
  %v212 = vsel %vm197, %v192, %v194
  %v213 = vsel %vm197, %v194, %v196
  %v230 = vpack.c.bf16 %v48, %v44
  %v231 = vpack.c.bf16 %v49, %v45
  %v232 = vpack.c.bf16 %v50, %v46
  %v233 = vpack.c.bf16 %v51, %v47
  %v234 = vpack.c.bf16 %v56, %v52
  %v235 = vpack.c.bf16 %v57, %v53
  %v236 = vpack.c.bf16 %v58, %v54
  %v237 = vpack.c.bf16 %v59, %v55
  %v238 = vpack.c.bf16 %v129, %v125
  %v239 = vpack.c.bf16 %v130, %v126
  %v240 = vpack.c.bf16 %v131, %v127
  %v241 = vpack.c.bf16 %v132, %v128
  %v242 = vpack.c.bf16 %v137, %v133
  %v243 = vpack.c.bf16 %v138, %v134
  %v244 = vpack.c.bf16 %v139, %v135
  %v245 = vpack.c.bf16 %v140, %v136
  %v246 = vpack.c.bf16 %v202, %v198
  %v247 = vpack.c.bf16 %v203, %v199
  %v248 = vpack.c.bf16 %v204, %v200
  %v249 = vpack.c.bf16 %v205, %v201
  %v250 = vpack.c.bf16 %v210, %v206
  %v251 = vpack.c.bf16 %v211, %v207
  %v252 = vpack.c.bf16 %v212, %v208
  %v253 = vpack.c.bf16 %v213, %v209
  %v254 = vld [vmem:[%s2] sm:$0xf]
  %v263 = vpack.c.bf16 %v61, %v60
  %v264 = vpack.c.bf16 %v63, %v62
  %v265 = vpack.c.bf16 %v103, %v93
  %v266 = vpack.c.bf16 %v123, %v113
  %v267 = vpack.c.bf16 %v176, %v166
  %v268 = vpack.c.bf16 %v196, %v186
  %v269 = vld [vmem:[%s2] sm:$0xff]
  %v271 = vunpack.c.l.b16 %v269
  %v272 = vunpack.c.h.b16 %v269
  %v273 = vpack.c.b16 %v271, %v271
  %v274 = vpack.c.b16 %v272, %v272
  %275 = vrot.lane.b32.xlu0 %v273, 32
  %v276 = vpop.permute.xlu0 %275
  %277 = vrot.lane.b32.xlu0 %v274, 32
  %v278 = vpop.permute.xlu0 %277
  %vm279 = vcmask 261120
  %v280 = vsel %vm279, %v276, %v278
  %311 = vrot.lane.b32.xlu0 %v230, 112
  %v312 = vpop.permute.xlu0 %311
  %313 = vrot.lane.b32.xlu0 %v231, 112
  %v314 = vpop.permute.xlu0 %313
  %315 = vrot.lane.b32.xlu0 %v232, 112
  %v316 = vpop.permute.xlu0 %315
  %317 = vrot.lane.b32.xlu0 %v233, 112
  %v318 = vpop.permute.xlu0 %317
  %319 = vrot.lane.b32.xlu0 %v263, 112
  %v320 = vpop.permute.xlu0 %319
  %321 = vrot.lane.b32.xlu0 %v234, 112
  %v322 = vpop.permute.xlu0 %321
  %323 = vrot.lane.b32.xlu0 %v235, 112
  %v324 = vpop.permute.xlu0 %323
  %325 = vrot.lane.b32.xlu0 %v236, 112
  %v326 = vpop.permute.xlu0 %325
  %327 = vrot.lane.b32.xlu0 %v237, 112
  %v328 = vpop.permute.xlu0 %327
  %329 = vrot.lane.b32.xlu0 %v264, 112
  %v330 = vpop.permute.xlu0 %329
  %331 = vrot.lane.b32.xlu0 %v238, 112
  %v332 = vpop.permute.xlu0 %331
  %333 = vrot.lane.b32.xlu0 %v239, 112
  %v334 = vpop.permute.xlu0 %333
  %335 = vrot.lane.b32.xlu0 %v240, 112
  %v336 = vpop.permute.xlu0 %335
  %337 = vrot.lane.b32.xlu0 %v241, 112
  %v338 = vpop.permute.xlu0 %337
  %339 = vrot.lane.b32.xlu0 %v265, 112
  %v340 = vpop.permute.xlu0 %339
  %341 = vrot.lane.b32.xlu0 %v242, 112
  %v342 = vpop.permute.xlu0 %341
  %343 = vrot.lane.b32.xlu0 %v243, 112
  %v344 = vpop.permute.xlu0 %343
  %345 = vrot.lane.b32.xlu0 %v244, 112
  %v346 = vpop.permute.xlu0 %345
  %347 = vrot.lane.b32.xlu0 %v245, 112
  %v348 = vpop.permute.xlu0 %347
  %349 = vrot.lane.b32.xlu0 %v266, 112
  %v350 = vpop.permute.xlu0 %349
  %351 = vrot.lane.b32.xlu0 %v246, 112
  %v352 = vpop.permute.xlu0 %351
  %353 = vrot.lane.b32.xlu0 %v247, 112
  %v354 = vpop.permute.xlu0 %353
  %355 = vrot.lane.b32.xlu0 %v248, 112
  %v356 = vpop.permute.xlu0 %355
  %357 = vrot.lane.b32.xlu0 %v249, 112
  %v358 = vpop.permute.xlu0 %357
  %359 = vrot.lane.b32.xlu0 %v267, 112
  %v360 = vpop.permute.xlu0 %359
  %361 = vrot.lane.b32.xlu0 %v250, 112
  %v362 = vpop.permute.xlu0 %361
  %363 = vrot.lane.b32.xlu0 %v251, 112
  %v364 = vpop.permute.xlu0 %363
  %365 = vrot.lane.b32.xlu0 %v252, 112
  %v366 = vpop.permute.xlu0 %365
  %367 = vrot.lane.b32.xlu0 %v253, 112
  %v368 = vpop.permute.xlu0 %367
  %369 = vrot.lane.b32.xlu0 %v268, 112
  %v370 = vpop.permute.xlu0 %369
  %vm371 = vcmask 916480
  %v372 = vsel %vm371, %v312, %v314
  %v373 = vsel %vm371, %v314, %v316
  %v374 = vsel %vm371, %v316, %v318
  %v375 = vsel %vm371, %v318, %v320
  %v376 = vsel %vm371, %v322, %v324
  %v377 = vsel %vm371, %v324, %v326
  %v378 = vsel %vm371, %v326, %v328
  %v379 = vsel %vm371, %v328, %v330
  %v380 = vsel %vm371, %v332, %v334
  %v381 = vsel %vm371, %v334, %v336
  %v382 = vsel %vm371, %v336, %v338
  %v383 = vsel %vm371, %v338, %v340
  %v384 = vsel %vm371, %v342, %v344
  %v385 = vsel %vm371, %v344, %v346
  %v386 = vsel %vm371, %v346, %v348
  %v387 = vsel %vm371, %v348, %v350
  %v388 = vsel %vm371, %v352, %v354
  %v389 = vsel %vm371, %v354, %v356
  %v390 = vsel %vm371, %v356, %v358
  %v391 = vsel %vm371, %v358, %v360
  %v392 = vsel %vm371, %v362, %v364
  %v393 = vsel %vm371, %v364, %v366
  %v394 = vsel %vm371, %v366, %v368
  %v395 = vsel %vm371, %v368, %v370
  %vm420 = vcmask 785408
  %v422 = vsel %vm420, %v280, 0
  %424 = vmatpush.bf16.msra.mxu0 0
  %425 = vmatpush.bf16.msra.mxu0 0
  %426 = vmatpush.bf16.msra.mxu0 %v392
  %427 = vmatpush.bf16.msra.mxu0 %v388
  %428 = vmatpush.bf16.msra.mxu0 %v384
  %429 = vmatpush.bf16.msra.mxu0 %v380
  %430 = vmatpush.bf16.msra.mxu0 %v376
  %431 = vmatpush.bf16.msra.mxu0 %v372
  %432 = vmatmul.bf16.gmra.mxu0 %v422
  %v433 = vpop.f32.mrf.mxu0
  %v434 = vadd.f32 0.0, %v433
  %v435 = vpop.f32.mrf.mxu0
  %436 = vdwg.mxu0
  %437 = vmatpush.bf16.msra.mxu0 0
  %438 = vmatpush.bf16.msra.mxu0 0
  %439 = vmatpush.bf16.msra.mxu0 %v393
  %440 = vmatpush.bf16.msra.mxu0 %v389
  %441 = vmatpush.bf16.msra.mxu0 %v385
  %442 = vmatpush.bf16.msra.mxu0 %v381
  %443 = vmatpush.bf16.msra.mxu0 %v377
  %444 = vmatpush.bf16.msra.mxu0 %v373
  %445 = vmatmul.bf16.gmra.mxu0 %v422
  %v446 = vpop.f32.mrf.mxu0
  %v447 = vadd.f32 0.0, %v446
  %v448 = vpop.f32.mrf.mxu0
  %449 = vdwg.mxu0
  %450 = vmatpush.bf16.msra.mxu0 0
  %451 = vmatpush.bf16.msra.mxu0 0
  %452 = vmatpush.bf16.msra.mxu0 %v394
  %453 = vmatpush.bf16.msra.mxu0 %v390
  %454 = vmatpush.bf16.msra.mxu0 %v386
  %455 = vmatpush.bf16.msra.mxu0 %v382
  %456 = vmatpush.bf16.msra.mxu0 %v378
  %457 = vmatpush.bf16.msra.mxu0 %v374
  %458 = vmatmul.bf16.gmra.mxu0 %v422
  %v459 = vpop.f32.mrf.mxu0
  %v460 = vadd.f32 0.0, %v459
  %v461 = vpop.f32.mrf.mxu0
  %462 = vdwg.mxu0
  %463 = vmatpush.bf16.msra.mxu0 0
  %464 = vmatpush.bf16.msra.mxu0 0
  %465 = vmatpush.bf16.msra.mxu0 %v395
  %466 = vmatpush.bf16.msra.mxu0 %v391
  %467 = vmatpush.bf16.msra.mxu0 %v387
  %468 = vmatpush.bf16.msra.mxu0 %v383
  %469 = vmatpush.bf16.msra.mxu0 %v379
  %470 = vmatpush.bf16.msra.mxu0 %v375
  %471 = vmatmul.bf16.gmra.mxu0 %v422
  %v472 = vpop.f32.mrf.mxu0
  %v473 = vadd.f32 0.0, %v472
  %v474 = vpop.f32.mrf.mxu0
  %475 = vdwg.mxu0
  %v477 = vsel %vm420, %v254, 0
  %479 = vmatpush.bf16.msra.mxu0 0
  %480 = vmatpush.bf16.msra.mxu0 0
  %481 = vmatpush.bf16.msra.mxu0 %v250
  %482 = vmatpush.bf16.msra.mxu0 %v246
  %483 = vmatpush.bf16.msra.mxu0 %v242
  %484 = vmatpush.bf16.msra.mxu0 %v238
  %485 = vmatpush.bf16.msra.mxu0 %v234
  %486 = vmatpush.bf16.msra.mxu0 %v230
  %487 = vmatmul.bf16.gmra.mxu0 %v477
  %v488 = vpop.f32.mrf.mxu0
  %v489 = vadd.f32 %v434, %v488
  %v490 = vpop.f32.mrf.mxu0
  %491 = vdwg.mxu0
  %492 = vmatpush.bf16.msra.mxu0 0
  %493 = vmatpush.bf16.msra.mxu0 0
  %494 = vmatpush.bf16.msra.mxu0 %v251
  %495 = vmatpush.bf16.msra.mxu0 %v247
  %496 = vmatpush.bf16.msra.mxu0 %v243
  %497 = vmatpush.bf16.msra.mxu0 %v239
  %498 = vmatpush.bf16.msra.mxu0 %v235
  %499 = vmatpush.bf16.msra.mxu0 %v231
  %500 = vmatmul.bf16.gmra.mxu0 %v477
  %v501 = vpop.f32.mrf.mxu0
  %v502 = vadd.f32 %v447, %v501
  %v503 = vpop.f32.mrf.mxu0
  %504 = vdwg.mxu0
  %505 = vmatpush.bf16.msra.mxu0 0
  %506 = vmatpush.bf16.msra.mxu0 0
  %507 = vmatpush.bf16.msra.mxu0 %v252
  %508 = vmatpush.bf16.msra.mxu0 %v248
  %509 = vmatpush.bf16.msra.mxu0 %v244
  %510 = vmatpush.bf16.msra.mxu0 %v240
  %511 = vmatpush.bf16.msra.mxu0 %v236
  %512 = vmatpush.bf16.msra.mxu0 %v232
  %513 = vmatmul.bf16.gmra.mxu0 %v477
  %v514 = vpop.f32.mrf.mxu0
  %v515 = vadd.f32 %v460, %v514
  %v516 = vpop.f32.mrf.mxu0
  %517 = vdwg.mxu0
  %518 = vmatpush.bf16.msra.mxu0 0
  %519 = vmatpush.bf16.msra.mxu0 0
  %520 = vmatpush.bf16.msra.mxu0 %v253
  %521 = vmatpush.bf16.msra.mxu0 %v249
  %522 = vmatpush.bf16.msra.mxu0 %v245
  %523 = vmatpush.bf16.msra.mxu0 %v241
  %524 = vmatpush.bf16.msra.mxu0 %v237
  %525 = vmatpush.bf16.msra.mxu0 %v233
  %526 = vmatmul.bf16.gmra.mxu0 %v477
  %v527 = vpop.f32.mrf.mxu0
  %v528 = vadd.f32 %v473, %v527
  %v529 = vpop.f32.mrf.mxu0
  %530 = vdwg.mxu0
  %v531 = vld [vmem:[%s2 + $0x4] sm:$0xff]
  %v533 = vunpack.c.l.b16 %v531
  %v534 = vunpack.c.h.b16 %v531
  %v535 = vpack.c.b16 %v533, %v533
  %v536 = vpack.c.b16 %v534, %v534
  %537 = vrot.lane.b32.xlu0 %v535, 64
  %v538 = vpop.permute.xlu0 %537
  %539 = vrot.lane.b32.xlu0 %v536, 64
  %v540 = vpop.permute.xlu0 %539
  %vm541 = vcmask 523264
  %v542 = vsel %vm541, %v538, %v540
  %543 = vrot.lane.b32.xlu0 %v230, 96
  %v544 = vpop.permute.xlu0 %543
  %545 = vrot.lane.b32.xlu0 %v231, 96
  %v546 = vpop.permute.xlu0 %545
  %547 = vrot.lane.b32.xlu0 %v232, 96
  %v548 = vpop.permute.xlu0 %547
  %549 = vrot.lane.b32.xlu0 %v233, 96
  %v550 = vpop.permute.xlu0 %549
  %551 = vrot.lane.b32.xlu0 %v263, 96
  %v552 = vpop.permute.xlu0 %551
  %553 = vrot.lane.b32.xlu0 %v234, 96
  %v554 = vpop.permute.xlu0 %553
  %555 = vrot.lane.b32.xlu0 %v235, 96
  %v556 = vpop.permute.xlu0 %555
  %557 = vrot.lane.b32.xlu0 %v236, 96
  %v558 = vpop.permute.xlu0 %557
  %559 = vrot.lane.b32.xlu0 %v237, 96
  %v560 = vpop.permute.xlu0 %559
  %561 = vrot.lane.b32.xlu0 %v264, 96
  %v562 = vpop.permute.xlu0 %561
  %563 = vrot.lane.b32.xlu0 %v238, 96
  %v564 = vpop.permute.xlu0 %563
  %565 = vrot.lane.b32.xlu0 %v239, 96
  %v566 = vpop.permute.xlu0 %565
  %567 = vrot.lane.b32.xlu0 %v240, 96
  %v568 = vpop.permute.xlu0 %567
  %569 = vrot.lane.b32.xlu0 %v241, 96
  %v570 = vpop.permute.xlu0 %569
  %571 = vrot.lane.b32.xlu0 %v265, 96
  %v572 = vpop.permute.xlu0 %571
  %573 = vrot.lane.b32.xlu0 %v242, 96
  %v574 = vpop.permute.xlu0 %573
  %575 = vrot.lane.b32.xlu0 %v243, 96
  %v576 = vpop.permute.xlu0 %575
  %577 = vrot.lane.b32.xlu0 %v244, 96
  %v578 = vpop.permute.xlu0 %577
  %579 = vrot.lane.b32.xlu0 %v245, 96
  %v580 = vpop.permute.xlu0 %579
  %581 = vrot.lane.b32.xlu0 %v266, 96
  %v582 = vpop.permute.xlu0 %581
  %583 = vrot.lane.b32.xlu0 %v246, 96
  %v584 = vpop.permute.xlu0 %583
  %585 = vrot.lane.b32.xlu0 %v247, 96
  %v586 = vpop.permute.xlu0 %585
  %587 = vrot.lane.b32.xlu0 %v248, 96
  %v588 = vpop.permute.xlu0 %587
  %589 = vrot.lane.b32.xlu0 %v249, 96
  %v590 = vpop.permute.xlu0 %589
  %591 = vrot.lane.b32.xlu0 %v267, 96
  %v592 = vpop.permute.xlu0 %591
  %593 = vrot.lane.b32.xlu0 %v250, 96
  %v594 = vpop.permute.xlu0 %593
  %595 = vrot.lane.b32.xlu0 %v251, 96
  %v596 = vpop.permute.xlu0 %595
  %597 = vrot.lane.b32.xlu0 %v252, 96
  %v598 = vpop.permute.xlu0 %597
  %599 = vrot.lane.b32.xlu0 %v253, 96
  %v600 = vpop.permute.xlu0 %599
  %601 = vrot.lane.b32.xlu0 %v268, 96
  %v602 = vpop.permute.xlu0 %601
  %vm603 = vcmask 785408
  %v604 = vsel %vm603, %v544, %v546
  %v605 = vsel %vm603, %v546, %v548
  %v606 = vsel %vm603, %v548, %v550
  %v607 = vsel %vm603, %v550, %v552
  %v608 = vsel %vm603, %v554, %v556
  %v609 = vsel %vm603, %v556, %v558
  %v610 = vsel %vm603, %v558, %v560
  %v611 = vsel %vm603, %v560, %v562
  %v612 = vsel %vm603, %v564, %v566
  %v613 = vsel %vm603, %v566, %v568
  %v614 = vsel %vm603, %v568, %v570
  %v615 = vsel %vm603, %v570, %v572
  %v616 = vsel %vm603, %v574, %v576
  %v617 = vsel %vm603, %v576, %v578
  %v618 = vsel %vm603, %v578, %v580
  %v619 = vsel %vm603, %v580, %v582
  %v620 = vsel %vm603, %v584, %v586
  %v621 = vsel %vm603, %v586, %v588
  %v622 = vsel %vm603, %v588, %v590
  %v623 = vsel %vm603, %v590, %v592
  %v624 = vsel %vm603, %v594, %v596
  %v625 = vsel %vm603, %v596, %v598
  %v626 = vsel %vm603, %v598, %v600
  %v627 = vsel %vm603, %v600, %v602
  %v653 = vsel %vm420, %v542, 0
  %655 = vmatpush.bf16.msra.mxu0 0
  %656 = vmatpush.bf16.msra.mxu0 0
  %657 = vmatpush.bf16.msra.mxu0 %v624
  %658 = vmatpush.bf16.msra.mxu0 %v620
  %659 = vmatpush.bf16.msra.mxu0 %v616
  %660 = vmatpush.bf16.msra.mxu0 %v612
  %661 = vmatpush.bf16.msra.mxu0 %v608
  %662 = vmatpush.bf16.msra.mxu0 %v604
  %663 = vmatmul.bf16.gmra.mxu0 %v653
  %v664 = vpop.f32.mrf.mxu0
  %v665 = vadd.f32 0.0, %v664
  %v666 = vpop.f32.mrf.mxu0
  %667 = vdwg.mxu0
  %668 = vmatpush.bf16.msra.mxu0 0
  %669 = vmatpush.bf16.msra.mxu0 0
  %670 = vmatpush.bf16.msra.mxu0 %v625
  %671 = vmatpush.bf16.msra.mxu0 %v621
  %672 = vmatpush.bf16.msra.mxu0 %v617
  %673 = vmatpush.bf16.msra.mxu0 %v613
  %674 = vmatpush.bf16.msra.mxu0 %v609
  %675 = vmatpush.bf16.msra.mxu0 %v605
  %676 = vmatmul.bf16.gmra.mxu0 %v653
  %v677 = vpop.f32.mrf.mxu0
  %v678 = vadd.f32 0.0, %v677
  %v679 = vpop.f32.mrf.mxu0
  %680 = vdwg.mxu0
  %681 = vmatpush.bf16.msra.mxu0 0
  %682 = vmatpush.bf16.msra.mxu0 0
  %683 = vmatpush.bf16.msra.mxu0 %v626
  %684 = vmatpush.bf16.msra.mxu0 %v622
  %685 = vmatpush.bf16.msra.mxu0 %v618
  %686 = vmatpush.bf16.msra.mxu0 %v614
  %687 = vmatpush.bf16.msra.mxu0 %v610
  %688 = vmatpush.bf16.msra.mxu0 %v606
  %689 = vmatmul.bf16.gmra.mxu0 %v653
  %v690 = vpop.f32.mrf.mxu0
  %v691 = vadd.f32 0.0, %v690
  %v692 = vpop.f32.mrf.mxu0
  %693 = vdwg.mxu0
  %694 = vmatpush.bf16.msra.mxu0 0
  %695 = vmatpush.bf16.msra.mxu0 0
  %696 = vmatpush.bf16.msra.mxu0 %v627
  %697 = vmatpush.bf16.msra.mxu0 %v623
  %698 = vmatpush.bf16.msra.mxu0 %v619
  %699 = vmatpush.bf16.msra.mxu0 %v615
  %700 = vmatpush.bf16.msra.mxu0 %v611
  %701 = vmatpush.bf16.msra.mxu0 %v607
  %702 = vmatmul.bf16.gmra.mxu0 %v653
  %v703 = vpop.f32.mrf.mxu0
  %v704 = vadd.f32 0.0, %v703
  %v705 = vpop.f32.mrf.mxu0
  %706 = vdwg.mxu0
  %v707 = vadd.f32 %v489, %v665
  %v708 = vadd.f32 %v502, %v678
  %v709 = vadd.f32 %v515, %v691
  %v710 = vadd.f32 %v528, %v704
  %v712 = vperm.slane %v39, 0
  %v713 = vperm.slane %v39, 1
  %v714 = vperm.slane %v39, 2
  %v715 = vperm.slane %v39, 3
  %v720 = vmul.f32 %v707, %v712
  %v721 = vmul.f32 %v708, %v713
  %v722 = vmul.f32 %v709, %v714
  %v723 = vmul.f32 %v710, %v715
  %v724 = vadd.f32 %v720, %v721
  %v725 = vadd.f32 %v724, %v722
  %v726 = vadd.f32 %v725, %v723
  %727 = vadd.xlane.f32.xlu0 %v726
  %v728 = vpop.xlane.xlu0 %727
  %v729 = vmul.f32 %v728, 0.0025510204
  %v730 = vmul.f32 %v720, %v720
  %v731 = vmul.f32 %v721, %v721
  %v732 = vmul.f32 %v722, %v722
  %v733 = vmul.f32 %v723, %v723
  %v734 = vadd.f32 %v730, %v731
  %v735 = vadd.f32 %v734, %v732
  %v736 = vadd.f32 %v735, %v733
  %737 = vadd.xlane.f32.xlu0 %v736
  %v738 = vpop.xlane.xlu0 %737
  %v739 = vmul.f32 %v738, 0.0025510204
  %v740 = vmul.f32 %v729, %v729
  %v741 = vsub.f32 %v739, %v740
  %v742 = vld [vmem:[%s3] sm:$0xff]
  %v743 = vmax.f32 %v741, 0.0
  %v744 = vadd.f32 %v743, 1e-05
  %v745 = vrsqrt.pop %v744
  %v746 = vmul.f32 %v745, %v744
  %v747 = vmul.f32 %v746, %v745
  %v748 = vmul.f32 0.5, %v747
  %v749 = vsub.f32 1.5, %v748
  %v750 = vmul.f32 %v745, %v749
  %vm751 = vweird.f32 %v744
  %vm752 = vweird.f32 %v745
  %vm753 = vmor %vm751, %vm752
  %v754 = vsel %vm753, %v745, %v750
  %v755 = vmul.f32 %v742, %v754
  %v756 = vld [vmem:[%s4] sm:$0xff]
  %v757 = vmul.f32 %v729, %v755
  %v758 = vsub.f32 %v756, %v757
  %760 = vset.pattern.permute.xlu0 0
  %761 = vperm.xlu0 %760, %v755
  %v762 = vpop.permute.xlu0 %761
  %v764 = vmul.f32 %v720, %v762
  %v765 = vmul.f32 %v721, %v762
  %v766 = vmul.f32 %v722, %v762
  %v767 = vmul.f32 %v723, %v762
  %769 = vset.pattern.permute.xlu0 0
  %770 = vperm.xlu0 %769, %v758
  %v771 = vpop.permute.xlu0 %770
  %v773 = vadd.f32 %v764, %v771
  %v774 = vadd.f32 %v765, %v771
  %v775 = vadd.f32 %v766, %v771
  %v776 = vadd.f32 %v767, %v771
  %v777 = vmax.f32 %v773, 0.0
  %v778 = vmax.f32 %v774, 0.0
  %v779 = vmax.f32 %v775, 0.0
  %v780 = vmax.f32 %v776, 0.0
  %v781 = vmul.f32 %v777, %v712
  %v782 = vmul.f32 %v778, %v713
  %v783 = vmul.f32 %v779, %v714
  %v784 = vmul.f32 %v780, %v715
  %789 = vrot.lane.b32.xlu0 %v781, 17
  %v790 = vpop.permute.xlu0 %789
  %791 = vrot.lane.b32.xlu0 %v782, 17
  %v792 = vpop.permute.xlu0 %791
  %793 = vrot.lane.b32.xlu0 %v783, 17
  %v794 = vpop.permute.xlu0 %793
  %795 = vrot.lane.b32.xlu0 %v784, 17
  %v796 = vpop.permute.xlu0 %795
  %v797 = vsel %vm40, %v790, %v792
  %v798 = vsel %vm40, %v792, %v794
  %v799 = vsel %vm40, %v794, %v796
  %vm805 = vcmask 1047688
  %806 = vst.msk [vmem:[#allocation2] sm:$0xff] %vm805, %v790
  %807 = vst [vmem:[#allocation2 + $0x8] sm:$0xff] %v797
  %808 = vst [vmem:[#allocation2 + $0x10] sm:$0xff] %v798
  %809 = vst [vmem:[#allocation2 + $0x18] sm:$0xff] %v799
  %810 = vst.msk [vmem:[#allocation2 + $0x20] sm:$0xff] %vm40, %v796
  %v811 = vld [vmem:[#allocation2] sm:$0xff]
  %v812 = vld [vmem:[#allocation2 + $0x8] sm:$0xff]
  %v813 = vld [vmem:[#allocation2 + $0x10] sm:$0xff]
  %v814 = vld [vmem:[#allocation2 + $0x18] sm:$0xff]
  %v815 = vld [vmem:[#allocation2 + $0x20] sm:$0xff]
  %821 = vrot.lane.b32.xlu0 %v811, 127
  %v822 = vpop.permute.xlu0 %821
  %823 = vrot.lane.b32.xlu0 %v812, 127
  %v824 = vpop.permute.xlu0 %823
  %825 = vrot.lane.b32.xlu0 %v813, 127
  %v826 = vpop.permute.xlu0 %825
  %827 = vrot.lane.b32.xlu0 %v814, 127
  %v828 = vpop.permute.xlu0 %827
  %829 = vrot.lane.b32.xlu0 %v815, 127
  %v830 = vpop.permute.xlu0 %829
  %v831 = vsel %vm124, %v822, %v824
  %v832 = vsel %vm124, %v824, %v826
  %v833 = vsel %vm124, %v826, %v828
  %v834 = vsel %vm124, %v828, %v830
  %839 = vrot.lane.b32.xlu0 %v811, 126
  %v840 = vpop.permute.xlu0 %839
  %841 = vrot.lane.b32.xlu0 %v812, 126
  %v842 = vpop.permute.xlu0 %841
  %843 = vrot.lane.b32.xlu0 %v813, 126
  %v844 = vpop.permute.xlu0 %843
  %845 = vrot.lane.b32.xlu0 %v814, 126
  %v846 = vpop.permute.xlu0 %845
  %847 = vrot.lane.b32.xlu0 %v815, 126
  %v848 = vpop.permute.xlu0 %847
  %v849 = vsel %vm197, %v840, %v842
  %v850 = vsel %vm197, %v842, %v844
  %v851 = vsel %vm197, %v844, %v846
  %v852 = vsel %vm197, %v846, %v848
  %857 = vrot.lane.b32.xlu0 %v811, 112
  %v858 = vpop.permute.xlu0 %857
  %859 = vrot.lane.b32.xlu0 %v812, 112
  %v860 = vpop.permute.xlu0 %859
  %861 = vrot.lane.b32.xlu0 %v813, 112
  %v862 = vpop.permute.xlu0 %861
  %863 = vrot.lane.b32.xlu0 %v814, 112
  %v864 = vpop.permute.xlu0 %863
  %865 = vrot.lane.b32.xlu0 %v815, 112
  %v866 = vpop.permute.xlu0 %865
  %vm867 = vcmask 916480
  %v868 = vsel %vm867, %v858, %v860
  %v869 = vsel %vm867, %v860, %v862
  %v870 = vsel %vm867, %v862, %v864
  %v871 = vsel %vm867, %v864, %v866
  %876 = vrot.lane.b32.xlu0 %v811, 111
  %v877 = vpop.permute.xlu0 %876
  %878 = vrot.lane.b32.xlu0 %v812, 111
  %v879 = vpop.permute.xlu0 %878
  %880 = vrot.lane.b32.xlu0 %v813, 111
  %v881 = vpop.permute.xlu0 %880
  %882 = vrot.lane.b32.xlu0 %v814, 111
  %v883 = vpop.permute.xlu0 %882
  %884 = vrot.lane.b32.xlu0 %v815, 111
  %v885 = vpop.permute.xlu0 %884
  %vm886 = vcmask 908288
  %v887 = vsel %vm886, %v877, %v879
  %v888 = vsel %vm886, %v879, %v881
  %v889 = vsel %vm886, %v881, %v883
  %v890 = vsel %vm886, %v883, %v885
  %895 = vrot.lane.b32.xlu0 %v811, 110
  %v896 = vpop.permute.xlu0 %895
  %897 = vrot.lane.b32.xlu0 %v812, 110
  %v898 = vpop.permute.xlu0 %897
  %899 = vrot.lane.b32.xlu0 %v813, 110
  %v900 = vpop.permute.xlu0 %899
  %901 = vrot.lane.b32.xlu0 %v814, 110
  %v902 = vpop.permute.xlu0 %901
  %903 = vrot.lane.b32.xlu0 %v815, 110
  %v904 = vpop.permute.xlu0 %903
  %vm905 = vcmask 900096
  %v906 = vsel %vm905, %v896, %v898
  %v907 = vsel %vm905, %v898, %v900
  %v908 = vsel %vm905, %v900, %v902
  %v909 = vsel %vm905, %v902, %v904
  %914 = vrot.lane.b32.xlu0 %v811, 96
  %v915 = vpop.permute.xlu0 %914
  %916 = vrot.lane.b32.xlu0 %v812, 96
  %v917 = vpop.permute.xlu0 %916
  %918 = vrot.lane.b32.xlu0 %v813, 96
  %v919 = vpop.permute.xlu0 %918
  %920 = vrot.lane.b32.xlu0 %v814, 96
  %v921 = vpop.permute.xlu0 %920
  %922 = vrot.lane.b32.xlu0 %v815, 96
  %v923 = vpop.permute.xlu0 %922
  %v924 = vsel %vm420, %v915, %v917
  %v925 = vsel %vm420, %v917, %v919
  %v926 = vsel %vm420, %v919, %v921
  %v927 = vsel %vm420, %v921, %v923
  %932 = vrot.lane.b32.xlu0 %v811, 95
  %v933 = vpop.permute.xlu0 %932
  %934 = vrot.lane.b32.xlu0 %v812, 95
  %v935 = vpop.permute.xlu0 %934
  %936 = vrot.lane.b32.xlu0 %v813, 95
  %v937 = vpop.permute.xlu0 %936
  %938 = vrot.lane.b32.xlu0 %v814, 95
  %v939 = vpop.permute.xlu0 %938
  %940 = vrot.lane.b32.xlu0 %v815, 95
  %v941 = vpop.permute.xlu0 %940
  %vm942 = vcmask 777216
  %v943 = vsel %vm942, %v933, %v935
  %v944 = vsel %vm942, %v935, %v937
  %v945 = vsel %vm942, %v937, %v939
  %v946 = vsel %vm942, %v939, %v941
  %951 = vrot.lane.b32.xlu0 %v811, 94
  %v952 = vpop.permute.xlu0 %951
  %953 = vrot.lane.b32.xlu0 %v812, 94
  %v954 = vpop.permute.xlu0 %953
  %955 = vrot.lane.b32.xlu0 %v813, 94
  %v956 = vpop.permute.xlu0 %955
  %957 = vrot.lane.b32.xlu0 %v814, 94
  %v958 = vpop.permute.xlu0 %957
  %959 = vrot.lane.b32.xlu0 %v815, 94
  %v960 = vpop.permute.xlu0 %959
  %vm961 = vcmask 769024
  %v962 = vsel %vm961, %v952, %v954
  %v963 = vsel %vm961, %v954, %v956
  %v964 = vsel %vm961, %v956, %v958
  %v965 = vsel %vm961, %v958, %v960
  %v970 = vpack.c.bf16 %v831, %v811
  %v971 = vpack.c.bf16 %v832, %v812
  %v972 = vpack.c.bf16 %v833, %v813
  %v973 = vpack.c.bf16 %v834, %v814
  %v974 = vpack.c.bf16 %v868, %v849
  %v975 = vpack.c.bf16 %v869, %v850
  %v976 = vpack.c.bf16 %v870, %v851
  %v977 = vpack.c.bf16 %v871, %v852
  %v978 = vpack.c.bf16 %v906, %v887
  %v979 = vpack.c.bf16 %v907, %v888
  %v980 = vpack.c.bf16 %v908, %v889
  %v981 = vpack.c.bf16 %v909, %v890
  %v982 = vpack.c.bf16 %v943, %v924
  %v983 = vpack.c.bf16 %v944, %v925
  %v984 = vpack.c.bf16 %v945, %v926
  %v985 = vpack.c.bf16 %v946, %v927
  %v986 = vpack.c.bf16 %v962, %v962
  %v987 = vpack.c.bf16 %v963, %v963
  %v988 = vpack.c.bf16 %v964, %v964
  %v989 = vpack.c.bf16 %v965, %v965
  %v990 = vld [vmem:[%s5] sm:$0xf]
  %vm991 = vcmask 588800
  %v993 = vsel %vm991, %v990, 0
  %vm995 = vcmask 1043456
  %v997 = vsel %vm995, %v986, 0
  %v1000 = vsel %vm995, %v987, 0
  %v1003 = vsel %vm995, %v988, 0
  %v1006 = vsel %vm995, %v989, 0
  %1008 = vmatpush.bf16.msra.mxu0 0
  %1009 = vmatpush.bf16.msra.mxu0 0
  %1010 = vmatpush.bf16.msra.mxu0 0
  %1011 = vmatpush.bf16.msra.mxu0 %v997
  %1012 = vmatpush.bf16.msra.mxu0 %v982
  %1013 = vmatpush.bf16.msra.mxu0 %v978
  %1014 = vmatpush.bf16.msra.mxu0 %v974
  %1015 = vmatpush.bf16.msra.mxu0 %v970
  %1016 = vmatmul.bf16.gmra.mxu0 %v993
  %v1017 = vpop.f32.mrf.mxu0
  %v1018 = vadd.f32 0.0, %v1017
  %v1019 = vpop.f32.mrf.mxu0
  %1020 = vdwg.mxu0
  %1021 = vmatpush.bf16.msra.mxu0 0
  %1022 = vmatpush.bf16.msra.mxu0 0
  %1023 = vmatpush.bf16.msra.mxu0 0
  %1024 = vmatpush.bf16.msra.mxu0 %v1000
  %1025 = vmatpush.bf16.msra.mxu0 %v983
  %1026 = vmatpush.bf16.msra.mxu0 %v979
  %1027 = vmatpush.bf16.msra.mxu0 %v975
  %1028 = vmatpush.bf16.msra.mxu0 %v971
  %1029 = vmatmul.bf16.gmra.mxu0 %v993
  %v1030 = vpop.f32.mrf.mxu0
  %v1031 = vadd.f32 0.0, %v1030
  %v1032 = vpop.f32.mrf.mxu0
  %1033 = vdwg.mxu0
  %1034 = vmatpush.bf16.msra.mxu0 0
  %1035 = vmatpush.bf16.msra.mxu0 0
  %1036 = vmatpush.bf16.msra.mxu0 0
  %1037 = vmatpush.bf16.msra.mxu0 %v1003
  %1038 = vmatpush.bf16.msra.mxu0 %v984
  %1039 = vmatpush.bf16.msra.mxu0 %v980
  %1040 = vmatpush.bf16.msra.mxu0 %v976
  %1041 = vmatpush.bf16.msra.mxu0 %v972
  %1042 = vmatmul.bf16.gmra.mxu0 %v993
  %v1043 = vpop.f32.mrf.mxu0
  %v1044 = vadd.f32 0.0, %v1043
  %v1045 = vpop.f32.mrf.mxu0
  %1046 = vdwg.mxu0
  %1047 = vmatpush.bf16.msra.mxu0 0
  %1048 = vmatpush.bf16.msra.mxu0 0
  %1049 = vmatpush.bf16.msra.mxu0 0
  %1050 = vmatpush.bf16.msra.mxu0 %v1006
  %1051 = vmatpush.bf16.msra.mxu0 %v985
  %1052 = vmatpush.bf16.msra.mxu0 %v981
  %1053 = vmatpush.bf16.msra.mxu0 %v977
  %1054 = vmatpush.bf16.msra.mxu0 %v973
  %1055 = vmatmul.bf16.gmra.mxu0 %v993
  %v1056 = vpop.f32.mrf.mxu0
  %v1057 = vadd.f32 0.0, %v1056
  %v1058 = vpop.f32.mrf.mxu0
  %1059 = vdwg.mxu0
  %v1060 = vmul.f32 %v1018, %v712
  %v1061 = vmul.f32 %v1031, %v713
  %v1062 = vmul.f32 %v1044, %v714
  %v1063 = vmul.f32 %v1057, %v715
  %v1064 = vadd.f32 %v1060, %v1061
  %v1065 = vadd.f32 %v1064, %v1062
  %v1066 = vadd.f32 %v1065, %v1063
  %1067 = vadd.xlane.f32.xlu0 %v1066
  %v1068 = vpop.xlane.xlu0 %1067
  %v1069 = vmul.f32 %v1068, 0.0025510204
  %v1070 = vmul.f32 %v1060, %v1060
  %v1071 = vmul.f32 %v1061, %v1061
  %v1072 = vmul.f32 %v1062, %v1062
  %v1073 = vmul.f32 %v1063, %v1063
  %v1074 = vadd.f32 %v1070, %v1071
  %v1075 = vadd.f32 %v1074, %v1072
  %v1076 = vadd.f32 %v1075, %v1073
  %1077 = vadd.xlane.f32.xlu0 %v1076
  %v1078 = vpop.xlane.xlu0 %1077
  %v1079 = vmul.f32 %v1078, 0.0025510204
  %v1080 = vmul.f32 %v1069, %v1069
  %v1081 = vsub.f32 %v1079, %v1080
  %v1082 = vld [vmem:[%s6] sm:$0xff]
  %v1083 = vmax.f32 %v1081, 0.0
  %v1084 = vadd.f32 %v1083, 1e-05
  %v1085 = vrsqrt.pop %v1084
  %v1086 = vmul.f32 %v1085, %v1084
  %v1087 = vmul.f32 %v1086, %v1085
  %v1088 = vmul.f32 0.5, %v1087
  %v1089 = vsub.f32 1.5, %v1088
  %v1090 = vmul.f32 %v1085, %v1089
  %vm1091 = vweird.f32 %v1084
  %vm1092 = vweird.f32 %v1085
  %vm1093 = vmor %vm1091, %vm1092
  %v1094 = vsel %vm1093, %v1085, %v1090
  %v1095 = vmul.f32 %v1082, %v1094
  %v1096 = vld [vmem:[%s7] sm:$0xff]
  %v1097 = vmul.f32 %v1069, %v1095
  %v1098 = vsub.f32 %v1096, %v1097
  %1100 = vset.pattern.permute.xlu0 0
  %1101 = vperm.xlu0 %1100, %v1095
  %v1102 = vpop.permute.xlu0 %1101
  %v1104 = vmul.f32 %v1060, %v1102
  %v1105 = vmul.f32 %v1061, %v1102
  %v1106 = vmul.f32 %v1062, %v1102
  %v1107 = vmul.f32 %v1063, %v1102
  %1109 = vset.pattern.permute.xlu0 0
  %1110 = vperm.xlu0 %1109, %v1098
  %v1111 = vpop.permute.xlu0 %1110
  %v1113 = vadd.f32 %v1104, %v1111
  %v1114 = vadd.f32 %v1105, %v1111
  %v1115 = vadd.f32 %v1106, %v1111
  %v1116 = vadd.f32 %v1107, %v1111
  %v1117 = vmax.f32 %v1113, 0.0
  %v1118 = vmax.f32 %v1114, 0.0
  %v1119 = vmax.f32 %v1115, 0.0
  %v1120 = vmax.f32 %v1116, 0.0
  %v1121 = vmul.f32 %v1117, %v712
  %v1122 = vmul.f32 %v1118, %v713
  %v1123 = vmul.f32 %v1119, %v714
  %v1124 = vmul.f32 %v1120, %v715
  %1129 = vrot.lane.b32.xlu0 %v1121, 17
  %v1130 = vpop.permute.xlu0 %1129
  %1131 = vrot.lane.b32.xlu0 %v1122, 17
  %v1132 = vpop.permute.xlu0 %1131
  %1133 = vrot.lane.b32.xlu0 %v1123, 17
  %v1134 = vpop.permute.xlu0 %1133
  %1135 = vrot.lane.b32.xlu0 %v1124, 17
  %v1136 = vpop.permute.xlu0 %1135
  %v1137 = vsel %vm40, %v1130, %v1132
  %v1138 = vsel %vm40, %v1132, %v1134
  %v1139 = vsel %vm40, %v1134, %v1136
  %1145 = vst.msk [vmem:[#allocation2] sm:$0xff] %vm805, %v1130
  %1146 = vst [vmem:[#allocation2 + $0x8] sm:$0xff] %v1137
  %1147 = vst [vmem:[#allocation2 + $0x10] sm:$0xff] %v1138
  %1148 = vst [vmem:[#allocation2 + $0x18] sm:$0xff] %v1139
  %1149 = vst.msk [vmem:[#allocation2 + $0x20] sm:$0xff] %vm40, %v1136
  %v1150 = vld [vmem:[#allocation2] sm:$0xff]
  %v1151 = vld [vmem:[#allocation2 + $0x8] sm:$0xff]
  %v1152 = vld [vmem:[#allocation2 + $0x10] sm:$0xff]
  %v1153 = vld [vmem:[#allocation2 + $0x18] sm:$0xff]
  %v1154 = vld [vmem:[#allocation2 + $0x20] sm:$0xff]
  %1160 = vrot.lane.b32.xlu0 %v1150, 127
  %v1161 = vpop.permute.xlu0 %1160
  %1162 = vrot.lane.b32.xlu0 %v1151, 127
  %v1163 = vpop.permute.xlu0 %1162
  %1164 = vrot.lane.b32.xlu0 %v1152, 127
  %v1165 = vpop.permute.xlu0 %1164
  %1166 = vrot.lane.b32.xlu0 %v1153, 127
  %v1167 = vpop.permute.xlu0 %1166
  %1168 = vrot.lane.b32.xlu0 %v1154, 127
  %v1169 = vpop.permute.xlu0 %1168
  %v1170 = vsel %vm124, %v1161, %v1163
  %v1171 = vsel %vm124, %v1163, %v1165
  %v1172 = vsel %vm124, %v1165, %v1167
  %v1173 = vsel %vm124, %v1167, %v1169
  %1178 = vrot.lane.b32.xlu0 %v1150, 126
  %v1179 = vpop.permute.xlu0 %1178
  %1180 = vrot.lane.b32.xlu0 %v1151, 126
  %v1181 = vpop.permute.xlu0 %1180
  %1182 = vrot.lane.b32.xlu0 %v1152, 126
  %v1183 = vpop.permute.xlu0 %1182
  %1184 = vrot.lane.b32.xlu0 %v1153, 126
  %v1185 = vpop.permute.xlu0 %1184
  %1186 = vrot.lane.b32.xlu0 %v1154, 126
  %v1187 = vpop.permute.xlu0 %1186
  %v1188 = vsel %vm197, %v1179, %v1181
  %v1189 = vsel %vm197, %v1181, %v1183
  %v1190 = vsel %vm197, %v1183, %v1185
  %v1191 = vsel %vm197, %v1185, %v1187
  %1196 = vrot.lane.b32.xlu0 %v1150, 112
  %v1197 = vpop.permute.xlu0 %1196
  %1198 = vrot.lane.b32.xlu0 %v1151, 112
  %v1199 = vpop.permute.xlu0 %1198
  %1200 = vrot.lane.b32.xlu0 %v1152, 112
  %v1201 = vpop.permute.xlu0 %1200
  %1202 = vrot.lane.b32.xlu0 %v1153, 112
  %v1203 = vpop.permute.xlu0 %1202
  %1204 = vrot.lane.b32.xlu0 %v1154, 112
  %v1205 = vpop.permute.xlu0 %1204
  %v1206 = vsel %vm867, %v1197, %v1199
  %v1207 = vsel %vm867, %v1199, %v1201
  %v1208 = vsel %vm867, %v1201, %v1203
  %v1209 = vsel %vm867, %v1203, %v1205
  %1214 = vrot.lane.b32.xlu0 %v1150, 111
  %v1215 = vpop.permute.xlu0 %1214
  %1216 = vrot.lane.b32.xlu0 %v1151, 111
  %v1217 = vpop.permute.xlu0 %1216
  %1218 = vrot.lane.b32.xlu0 %v1152, 111
  %v1219 = vpop.permute.xlu0 %1218
  %1220 = vrot.lane.b32.xlu0 %v1153, 111
  %v1221 = vpop.permute.xlu0 %1220
  %1222 = vrot.lane.b32.xlu0 %v1154, 111
  %v1223 = vpop.permute.xlu0 %1222
  %v1224 = vsel %vm886, %v1215, %v1217
  %v1225 = vsel %vm886, %v1217, %v1219
  %v1226 = vsel %vm886, %v1219, %v1221
  %v1227 = vsel %vm886, %v1221, %v1223
  %1232 = vrot.lane.b32.xlu0 %v1150, 110
  %v1233 = vpop.permute.xlu0 %1232
  %1234 = vrot.lane.b32.xlu0 %v1151, 110
  %v1235 = vpop.permute.xlu0 %1234
  %1236 = vrot.lane.b32.xlu0 %v1152, 110
  %v1237 = vpop.permute.xlu0 %1236
  %1238 = vrot.lane.b32.xlu0 %v1153, 110
  %v1239 = vpop.permute.xlu0 %1238
  %1240 = vrot.lane.b32.xlu0 %v1154, 110
  %v1241 = vpop.permute.xlu0 %1240
  %v1242 = vsel %vm905, %v1233, %v1235
  %v1243 = vsel %vm905, %v1235, %v1237
  %v1244 = vsel %vm905, %v1237, %v1239
  %v1245 = vsel %vm905, %v1239, %v1241
  %1250 = vrot.lane.b32.xlu0 %v1150, 96
  %v1251 = vpop.permute.xlu0 %1250
  %1252 = vrot.lane.b32.xlu0 %v1151, 96
  %v1253 = vpop.permute.xlu0 %1252
  %1254 = vrot.lane.b32.xlu0 %v1152, 96
  %v1255 = vpop.permute.xlu0 %1254
  %1256 = vrot.lane.b32.xlu0 %v1153, 96
  %v1257 = vpop.permute.xlu0 %1256
  %1258 = vrot.lane.b32.xlu0 %v1154, 96
  %v1259 = vpop.permute.xlu0 %1258
  %v1260 = vsel %vm420, %v1251, %v1253
  %v1261 = vsel %vm420, %v1253, %v1255
  %v1262 = vsel %vm420, %v1255, %v1257
  %v1263 = vsel %vm420, %v1257, %v1259
  %1268 = vrot.lane.b32.xlu0 %v1150, 95
  %v1269 = vpop.permute.xlu0 %1268
  %1270 = vrot.lane.b32.xlu0 %v1151, 95
  %v1271 = vpop.permute.xlu0 %1270
  %1272 = vrot.lane.b32.xlu0 %v1152, 95
  %v1273 = vpop.permute.xlu0 %1272
  %1274 = vrot.lane.b32.xlu0 %v1153, 95
  %v1275 = vpop.permute.xlu0 %1274
  %1276 = vrot.lane.b32.xlu0 %v1154, 95
  %v1277 = vpop.permute.xlu0 %1276
  %v1278 = vsel %vm942, %v1269, %v1271
  %v1279 = vsel %vm942, %v1271, %v1273
  %v1280 = vsel %vm942, %v1273, %v1275
  %v1281 = vsel %vm942, %v1275, %v1277
  %1286 = vrot.lane.b32.xlu0 %v1150, 94
  %v1287 = vpop.permute.xlu0 %1286
  %1288 = vrot.lane.b32.xlu0 %v1151, 94
  %v1289 = vpop.permute.xlu0 %1288
  %1290 = vrot.lane.b32.xlu0 %v1152, 94
  %v1291 = vpop.permute.xlu0 %1290
  %1292 = vrot.lane.b32.xlu0 %v1153, 94
  %v1293 = vpop.permute.xlu0 %1292
  %1294 = vrot.lane.b32.xlu0 %v1154, 94
  %v1295 = vpop.permute.xlu0 %1294
  %v1296 = vsel %vm961, %v1287, %v1289
  %v1297 = vsel %vm961, %v1289, %v1291
  %v1298 = vsel %vm961, %v1291, %v1293
  %v1299 = vsel %vm961, %v1293, %v1295
  %v1304 = vpack.c.bf16 %v1170, %v1150
  %v1305 = vpack.c.bf16 %v1171, %v1151
  %v1306 = vpack.c.bf16 %v1172, %v1152
  %v1307 = vpack.c.bf16 %v1173, %v1153
  %v1308 = vpack.c.bf16 %v1206, %v1188
  %v1309 = vpack.c.bf16 %v1207, %v1189
  %v1310 = vpack.c.bf16 %v1208, %v1190
  %v1311 = vpack.c.bf16 %v1209, %v1191
  %v1312 = vpack.c.bf16 %v1242, %v1224
  %v1313 = vpack.c.bf16 %v1243, %v1225
  %v1314 = vpack.c.bf16 %v1244, %v1226
  %v1315 = vpack.c.bf16 %v1245, %v1227
  %v1316 = vpack.c.bf16 %v1278, %v1260
  %v1317 = vpack.c.bf16 %v1279, %v1261
  %v1318 = vpack.c.bf16 %v1280, %v1262
  %v1319 = vpack.c.bf16 %v1281, %v1263
  %v1320 = vpack.c.bf16 %v1296, %v1296
  %v1321 = vpack.c.bf16 %v1297, %v1297
  %v1322 = vpack.c.bf16 %v1298, %v1298
  %v1323 = vpack.c.bf16 %v1299, %v1299
  %v1324 = vld [vmem:[%s8] sm:$0xf]
  %v1325 = vld [vmem:[%s8 + $0x4] sm:$0xf]
  %v1326 = vld [vmem:[%s8 + $0x8] sm:$0xf]
  %v1327 = vld [vmem:[%s8 + $0xc] sm:$0xf]
  %v1332 = vunpack.c.l.b16 %v1324
  %v1333 = vunpack.c.l.b16 %v1325
  %v1334 = vunpack.c.l.b16 %v1326
  %v1335 = vunpack.c.l.b16 %v1327
  %v1336 = vpack.c.b16 %v1333, %v1332
  %v1337 = vpack.c.b16 %v1335, %v1334
  %v1339 = vsel %vm991, %v1336, 0
  %v1342 = vsel %vm991, %v1337, 0
  %v1345 = vsel %vm995, %v1320, 0
  %v1348 = vsel %vm995, %v1321, 0
  %v1351 = vsel %vm995, %v1322, 0
  %v1354 = vsel %vm995, %v1323, 0
  %1356 = vmatpush.bf16.msra.mxu0 0
  %1357 = vmatpush.bf16.msra.mxu0 0
  %1358 = vmatpush.bf16.msra.mxu0 0
  %1359 = vmatpush.bf16.msra.mxu0 %v1345
  %1360 = vmatpush.bf16.msra.mxu0 %v1316
  %1361 = vmatpush.bf16.msra.mxu0 %v1312
  %1362 = vmatpush.bf16.msra.mxu0 %v1308
  %1363 = vmatpush.bf16.msra.mxu0 %v1304
  %1364 = vmatmul.bf16.gmra.mxu0 %v1339
  %v1365 = vpop.f32.mrf.mxu0
  %v1366 = vadd.f32 0.0, %v1365
  %v1367 = vpop.f32.mrf.mxu0
  %v1368 = vadd.f32 0.0, %v1367
  %1369 = vmatmul.bf16.gmra.mxu0 %v1342
  %v1370 = vpop.f32.mrf.mxu0
  %v1371 = vadd.f32 0.0, %v1370
  %v1372 = vpop.f32.mrf.mxu0
  %v1373 = vadd.f32 0.0, %v1372
  %1374 = vdwg.mxu0
  %1375 = vmatpush.bf16.msra.mxu0 0
  %1376 = vmatpush.bf16.msra.mxu0 0
  %1377 = vmatpush.bf16.msra.mxu0 0
  %1378 = vmatpush.bf16.msra.mxu0 %v1348
  %1379 = vmatpush.bf16.msra.mxu0 %v1317
  %1380 = vmatpush.bf16.msra.mxu0 %v1313
  %1381 = vmatpush.bf16.msra.mxu0 %v1309
  %1382 = vmatpush.bf16.msra.mxu0 %v1305
  %1383 = vmatmul.bf16.gmra.mxu0 %v1339
  %v1384 = vpop.f32.mrf.mxu0
  %v1385 = vadd.f32 0.0, %v1384
  %v1386 = vpop.f32.mrf.mxu0
  %v1387 = vadd.f32 0.0, %v1386
  %1388 = vmatmul.bf16.gmra.mxu0 %v1342
  %v1389 = vpop.f32.mrf.mxu0
  %v1390 = vadd.f32 0.0, %v1389
  %v1391 = vpop.f32.mrf.mxu0
  %v1392 = vadd.f32 0.0, %v1391
  %1393 = vdwg.mxu0
  %1394 = vmatpush.bf16.msra.mxu0 0
  %1395 = vmatpush.bf16.msra.mxu0 0
  %1396 = vmatpush.bf16.msra.mxu0 0
  %1397 = vmatpush.bf16.msra.mxu0 %v1351
  %1398 = vmatpush.bf16.msra.mxu0 %v1318
  %1399 = vmatpush.bf16.msra.mxu0 %v1314
  %1400 = vmatpush.bf16.msra.mxu0 %v1310
  %1401 = vmatpush.bf16.msra.mxu0 %v1306
  %1402 = vmatmul.bf16.gmra.mxu0 %v1339
  %v1403 = vpop.f32.mrf.mxu0
  %v1404 = vadd.f32 0.0, %v1403
  %v1405 = vpop.f32.mrf.mxu0
  %v1406 = vadd.f32 0.0, %v1405
  %1407 = vmatmul.bf16.gmra.mxu0 %v1342
  %v1408 = vpop.f32.mrf.mxu0
  %v1409 = vadd.f32 0.0, %v1408
  %v1410 = vpop.f32.mrf.mxu0
  %v1411 = vadd.f32 0.0, %v1410
  %1412 = vdwg.mxu0
  %1413 = vmatpush.bf16.msra.mxu0 0
  %1414 = vmatpush.bf16.msra.mxu0 0
  %1415 = vmatpush.bf16.msra.mxu0 0
  %1416 = vmatpush.bf16.msra.mxu0 %v1354
  %1417 = vmatpush.bf16.msra.mxu0 %v1319
  %1418 = vmatpush.bf16.msra.mxu0 %v1315
  %1419 = vmatpush.bf16.msra.mxu0 %v1311
  %1420 = vmatpush.bf16.msra.mxu0 %v1307
  %1421 = vmatmul.bf16.gmra.mxu0 %v1339
  %v1422 = vpop.f32.mrf.mxu0
  %v1423 = vadd.f32 0.0, %v1422
  %v1424 = vpop.f32.mrf.mxu0
  %v1425 = vadd.f32 0.0, %v1424
  %1426 = vmatmul.bf16.gmra.mxu0 %v1342
  %v1427 = vpop.f32.mrf.mxu0
  %v1428 = vadd.f32 0.0, %v1427
  %v1429 = vpop.f32.mrf.mxu0
  %v1430 = vadd.f32 0.0, %v1429
  %1431 = vdwg.mxu0
  %v1432 = vmul.f32 %v1366, %v712
  %v1433 = vmul.f32 %v1385, %v713
  %v1434 = vmul.f32 %v1404, %v714
  %v1435 = vmul.f32 %v1423, %v715
  %v1436 = vmul.f32 %v1368, %v712
  %v1437 = vmul.f32 %v1387, %v713
  %v1438 = vmul.f32 %v1406, %v714
  %v1439 = vmul.f32 %v1425, %v715
  %v1440 = vmul.f32 %v1371, %v712
  %v1441 = vmul.f32 %v1390, %v713
  %v1442 = vmul.f32 %v1409, %v714
  %v1443 = vmul.f32 %v1428, %v715
  %v1444 = vmul.f32 %v1373, %v712
  %v1445 = vmul.f32 %v1392, %v713
  %v1446 = vmul.f32 %v1411, %v714
  %v1447 = vmul.f32 %v1430, %v715
  %v1448 = vadd.f32 %v1432, %v1433
  %v1449 = vadd.f32 %v1448, %v1434
  %v1450 = vadd.f32 %v1449, %v1435
  %1451 = vadd.xlane.f32.xlu0 %v1450
  %v1452 = vpop.xlane.xlu0 %1451
  %v1453 = vadd.f32 %v1436, %v1437
  %v1454 = vadd.f32 %v1453, %v1438
  %v1455 = vadd.f32 %v1454, %v1439
  %1456 = vadd.xlane.f32.xlu0 %v1455
  %v1457 = vpop.xlane.xlu0 %1456
  %v1458 = vadd.f32 %v1440, %v1441
  %v1459 = vadd.f32 %v1458, %v1442
  %v1460 = vadd.f32 %v1459, %v1443
  %1461 = vadd.xlane.f32.xlu0 %v1460
  %v1462 = vpop.xlane.xlu0 %1461
  %v1463 = vadd.f32 %v1444, %v1445
  %v1464 = vadd.f32 %v1463, %v1446
  %v1465 = vadd.f32 %v1464, %v1447
  %1466 = vadd.xlane.f32.xlu0 %v1465
  %v1467 = vpop.xlane.xlu0 %1466
  %v1468 = vmul.f32 %v1452, 0.0025510204
  %v1469 = vmul.f32 %v1457, 0.0025510204
  %v1470 = vmul.f32 %v1462, 0.0025510204
  %v1471 = vmul.f32 %v1467, 0.0025510204
  %v1472 = vmul.f32 %v1432, %v1432
  %v1473 = vmul.f32 %v1433, %v1433
  %v1474 = vmul.f32 %v1434, %v1434
  %v1475 = vmul.f32 %v1435, %v1435
  %v1476 = vmul.f32 %v1436, %v1436
  %v1477 = vmul.f32 %v1437, %v1437
  %v1478 = vmul.f32 %v1438, %v1438
  %v1479 = vmul.f32 %v1439, %v1439
  %v1480 = vmul.f32 %v1440, %v1440
  %v1481 = vmul.f32 %v1441, %v1441
  %v1482 = vmul.f32 %v1442, %v1442
  %v1483 = vmul.f32 %v1443, %v1443
  %v1484 = vmul.f32 %v1444, %v1444
  %v1485 = vmul.f32 %v1445, %v1445
  %v1486 = vmul.f32 %v1446, %v1446
  %v1487 = vmul.f32 %v1447, %v1447
  %v1488 = vadd.f32 %v1472, %v1473
  %v1489 = vadd.f32 %v1488, %v1474
  %v1490 = vadd.f32 %v1489, %v1475
  %1491 = vadd.xlane.f32.xlu0 %v1490
  %v1492 = vpop.xlane.xlu0 %1491
  %v1493 = vadd.f32 %v1476, %v1477
  %v1494 = vadd.f32 %v1493, %v1478
  %v1495 = vadd.f32 %v1494, %v1479
  %1496 = vadd.xlane.f32.xlu0 %v1495
  %v1497 = vpop.xlane.xlu0 %1496
  %v1498 = vadd.f32 %v1480, %v1481
  %v1499 = vadd.f32 %v1498, %v1482
  %v1500 = vadd.f32 %v1499, %v1483
  %1501 = vadd.xlane.f32.xlu0 %v1500
  %v1502 = vpop.xlane.xlu0 %1501
  %v1503 = vadd.f32 %v1484, %v1485
  %v1504 = vadd.f32 %v1503, %v1486
  %v1505 = vadd.f32 %v1504, %v1487
  %1506 = vadd.xlane.f32.xlu0 %v1505
  %v1507 = vpop.xlane.xlu0 %1506
  %v1508 = vmul.f32 %v1492, 0.0025510204
  %v1509 = vmul.f32 %v1497, 0.0025510204
  %v1510 = vmul.f32 %v1502, 0.0025510204
  %v1511 = vmul.f32 %v1507, 0.0025510204
  %v1512 = vmul.f32 %v1468, %v1468
  %v1513 = vmul.f32 %v1469, %v1469
  %v1514 = vmul.f32 %v1470, %v1470
  %v1515 = vmul.f32 %v1471, %v1471
  %v1516 = vsub.f32 %v1508, %v1512
  %v1517 = vsub.f32 %v1509, %v1513
  %v1518 = vsub.f32 %v1510, %v1514
  %v1519 = vsub.f32 %v1511, %v1515
  %v1520 = vld [vmem:[%s9] sm:$0xff]
  %v1521 = vld [vmem:[%s9 + $0x8] sm:$0xff]
  %v1522 = vld [vmem:[%s9 + $0x10] sm:$0xff]
  %v1523 = vld [vmem:[%s9 + $0x18] sm:$0xff]
  %v1524 = vmax.f32 %v1516, 0.0
  %v1525 = vmax.f32 %v1517, 0.0
  %v1526 = vmax.f32 %v1518, 0.0
  %v1527 = vmax.f32 %v1519, 0.0
  %v1528 = vadd.f32 %v1524, 1e-05
  %v1529 = vadd.f32 %v1525, 1e-05
  %v1530 = vadd.f32 %v1526, 1e-05
  %v1531 = vadd.f32 %v1527, 1e-05
  %v1532 = vrsqrt.pop %v1528
  %v1533 = vmul.f32 %v1532, %v1528
  %v1534 = vmul.f32 %v1533, %v1532
  %v1535 = vmul.f32 0.5, %v1534
  %v1536 = vsub.f32 1.5, %v1535
  %v1537 = vmul.f32 %v1532, %v1536
  %vm1538 = vweird.f32 %v1528
  %vm1539 = vweird.f32 %v1532
  %vm1540 = vmor %vm1538, %vm1539
  %v1541 = vsel %vm1540, %v1532, %v1537
  %v1542 = vrsqrt.pop %v1529
  %v1543 = vmul.f32 %v1542, %v1529
  %v1544 = vmul.f32 %v1543, %v1542
  %v1545 = vmul.f32 0.5, %v1544
  %v1546 = vsub.f32 1.5, %v1545
  %v1547 = vmul.f32 %v1542, %v1546
  %vm1548 = vweird.f32 %v1529
  %vm1549 = vweird.f32 %v1542
  %vm1550 = vmor %vm1548, %vm1549
  %v1551 = vsel %vm1550, %v1542, %v1547
  %v1552 = vrsqrt.pop %v1530
  %v1553 = vmul.f32 %v1552, %v1530
  %v1554 = vmul.f32 %v1553, %v1552
  %v1555 = vmul.f32 0.5, %v1554
  %v1556 = vsub.f32 1.5, %v1555
  %v1557 = vmul.f32 %v1552, %v1556
  %vm1558 = vweird.f32 %v1530
  %vm1559 = vweird.f32 %v1552
  %vm1560 = vmor %vm1558, %vm1559
  %v1561 = vsel %vm1560, %v1552, %v1557
  %v1562 = vrsqrt.pop %v1531
  %v1563 = vmul.f32 %v1562, %v1531
  %v1564 = vmul.f32 %v1563, %v1562
  %v1565 = vmul.f32 0.5, %v1564
  %v1566 = vsub.f32 1.5, %v1565
  %v1567 = vmul.f32 %v1562, %v1566
  %vm1568 = vweird.f32 %v1531
  %vm1569 = vweird.f32 %v1562
  %vm1570 = vmor %vm1568, %vm1569
  %v1571 = vsel %vm1570, %v1562, %v1567
  %v1572 = vmul.f32 %v1520, %v1541
  %v1573 = vmul.f32 %v1521, %v1551
  %v1574 = vmul.f32 %v1522, %v1561
  %v1575 = vmul.f32 %v1523, %v1571
  %v1576 = vld [vmem:[%s10] sm:$0xff]
  %v1577 = vld [vmem:[%s10 + $0x8] sm:$0xff]
  %v1578 = vld [vmem:[%s10 + $0x10] sm:$0xff]
  %v1579 = vld [vmem:[%s10 + $0x18] sm:$0xff]
  %v1580 = vmul.f32 %v1468, %v1572
  %v1581 = vmul.f32 %v1469, %v1573
  %v1582 = vmul.f32 %v1470, %v1574
  %v1583 = vmul.f32 %v1471, %v1575
  %v1584 = vsub.f32 %v1576, %v1580
  %v1585 = vsub.f32 %v1577, %v1581
  %v1586 = vsub.f32 %v1578, %v1582
  %v1587 = vsub.f32 %v1579, %v1583
  %v1588 = vld [vmem:[%s0] sm:$0xff]
  %v1589 = vld [vmem:[%s0 + $0x8] sm:$0xff]
  %v1590 = vld [vmem:[%s0 + $0x10] sm:$0xff]
  %v1591 = vld [vmem:[%s0 + $0x18] sm:$0xff]
  %v1592 = vld [vmem:[%s0 + $0x20] sm:$0xff]
  %v1593 = vld [vmem:[%s0 + $0x28] sm:$0xff]
  %v1594 = vld [vmem:[%s0 + $0x30] sm:$0xff]
  %v1595 = vld [vmem:[%s0 + $0x38] sm:$0xff]
  %v1596 = vld [vmem:[%s0 + $0x40] sm:$0xff]
  %v1597 = vld [vmem:[%s0 + $0x48] sm:$0xff]
  %v1598 = vld [vmem:[%s0 + $0x50] sm:$0xff]
  %v1599 = vld [vmem:[%s0 + $0x58] sm:$0xff]
  %v1600 = vld [vmem:[%s0 + $0x60] sm:$0xff]
  %v1601 = vld [vmem:[%s0 + $0x68] sm:$0xff]
  %v1602 = vld [vmem:[%s0 + $0x70] sm:$0xff]
  %v1603 = vld [vmem:[%s0 + $0x78] sm:$0xff]
  %v1604 = vld [vmem:[%s0 + $0x80] sm:$0xff]
  %v1605 = vld [vmem:[%s0 + $0x88] sm:$0xff]
  %v1606 = vld [vmem:[%s0 + $0x90] sm:$0xff]
  %v1607 = vld [vmem:[%s0 + $0x98] sm:$0xff]
  %1609 = vset.pattern.permute.xlu0 0
  %1610 = vperm.xlu0 %1609, %v1572
  %v1611 = vpop.permute.xlu0 %1610
  %1614 = vset.pattern.permute.xlu0 0
  %1615 = vperm.xlu0 %1614, %v1573
  %v1616 = vpop.permute.xlu0 %1615
  %1619 = vset.pattern.permute.xlu0 0
  %1620 = vperm.xlu0 %1619, %v1574
  %v1621 = vpop.permute.xlu0 %1620
  %1624 = vset.pattern.permute.xlu0 0
  %1625 = vperm.xlu0 %1624, %v1575
  %v1626 = vpop.permute.xlu0 %1625
  %v1628 = vmul.f32 %v1432, %v1611
  %v1629 = vmul.f32 %v1433, %v1611
  %v1630 = vmul.f32 %v1434, %v1611
  %v1631 = vmul.f32 %v1435, %v1611
  %v1632 = vmul.f32 %v1436, %v1616
  %v1633 = vmul.f32 %v1437, %v1616
  %v1634 = vmul.f32 %v1438, %v1616
  %v1635 = vmul.f32 %v1439, %v1616
  %v1636 = vmul.f32 %v1440, %v1621
  %v1637 = vmul.f32 %v1441, %v1621
  %v1638 = vmul.f32 %v1442, %v1621
  %v1639 = vmul.f32 %v1443, %v1621
  %v1640 = vmul.f32 %v1444, %v1626
  %v1641 = vmul.f32 %v1445, %v1626
  %v1642 = vmul.f32 %v1446, %v1626
  %v1643 = vmul.f32 %v1447, %v1626
  %1645 = vset.pattern.permute.xlu0 0
  %1646 = vperm.xlu0 %1645, %v1584
  %v1647 = vpop.permute.xlu0 %1646
  %1650 = vset.pattern.permute.xlu0 0
  %1651 = vperm.xlu0 %1650, %v1585
  %v1652 = vpop.permute.xlu0 %1651
  %1655 = vset.pattern.permute.xlu0 0
  %1656 = vperm.xlu0 %1655, %v1586
  %v1657 = vpop.permute.xlu0 %1656
  %1660 = vset.pattern.permute.xlu0 0
  %1661 = vperm.xlu0 %1660, %v1587
  %v1662 = vpop.permute.xlu0 %1661
  %v1664 = vadd.f32 %v1628, %v1647
  %v1665 = vadd.f32 %v1629, %v1647
  %v1666 = vadd.f32 %v1630, %v1647
  %v1667 = vadd.f32 %v1631, %v1647
  %v1668 = vadd.f32 %v1632, %v1652
  %v1669 = vadd.f32 %v1633, %v1652
  %v1670 = vadd.f32 %v1634, %v1652
  %v1671 = vadd.f32 %v1635, %v1652
  %v1672 = vadd.f32 %v1636, %v1657
  %v1673 = vadd.f32 %v1637, %v1657
  %v1674 = vadd.f32 %v1638, %v1657
  %v1675 = vadd.f32 %v1639, %v1657
  %v1676 = vadd.f32 %v1640, %v1662
  %v1677 = vadd.f32 %v1641, %v1662
  %v1678 = vadd.f32 %v1642, %v1662
  %v1679 = vadd.f32 %v1643, %v1662
  %1700 = vrot.lane.b32.xlu0 %v1588, 111
  %v1701 = vpop.permute.xlu0 %1700
  %1702 = vrot.lane.b32.xlu0 %v1589, 111
  %v1703 = vpop.permute.xlu0 %1702
  %1704 = vrot.lane.b32.xlu0 %v1590, 111
  %v1705 = vpop.permute.xlu0 %1704
  %1706 = vrot.lane.b32.xlu0 %v1591, 111
  %v1707 = vpop.permute.xlu0 %1706
  %1708 = vrot.lane.b32.xlu0 %v1592, 111
  %v1709 = vpop.permute.xlu0 %1708
  %1710 = vrot.lane.b32.xlu0 %v1593, 111
  %v1711 = vpop.permute.xlu0 %1710
  %1712 = vrot.lane.b32.xlu0 %v1594, 111
  %v1713 = vpop.permute.xlu0 %1712
  %1714 = vrot.lane.b32.xlu0 %v1595, 111
  %v1715 = vpop.permute.xlu0 %1714
  %1716 = vrot.lane.b32.xlu0 %v1596, 111
  %v1717 = vpop.permute.xlu0 %1716
  %1718 = vrot.lane.b32.xlu0 %v1597, 111
  %v1719 = vpop.permute.xlu0 %1718
  %1720 = vrot.lane.b32.xlu0 %v1598, 111
  %v1721 = vpop.permute.xlu0 %1720
  %1722 = vrot.lane.b32.xlu0 %v1599, 111
  %v1723 = vpop.permute.xlu0 %1722
  %1724 = vrot.lane.b32.xlu0 %v1600, 111
  %v1725 = vpop.permute.xlu0 %1724
  %1726 = vrot.lane.b32.xlu0 %v1601, 111
  %v1727 = vpop.permute.xlu0 %1726
  %1728 = vrot.lane.b32.xlu0 %v1602, 111
  %v1729 = vpop.permute.xlu0 %1728
  %1730 = vrot.lane.b32.xlu0 %v1603, 111
  %v1731 = vpop.permute.xlu0 %1730
  %1732 = vrot.lane.b32.xlu0 %v1604, 111
  %v1733 = vpop.permute.xlu0 %1732
  %1734 = vrot.lane.b32.xlu0 %v1605, 111
  %v1735 = vpop.permute.xlu0 %1734
  %1736 = vrot.lane.b32.xlu0 %v1606, 111
  %v1737 = vpop.permute.xlu0 %1736
  %1738 = vrot.lane.b32.xlu0 %v1607, 111
  %v1739 = vpop.permute.xlu0 %1738
  %v1740 = vsel %vm886, %v1701, %v1703
  %v1741 = vsel %vm886, %v1703, %v1705
  %v1742 = vsel %vm886, %v1705, %v1707
  %v1743 = vsel %vm886, %v1707, %v1709
  %v1744 = vsel %vm886, %v1711, %v1713
  %v1745 = vsel %vm886, %v1713, %v1715
  %v1746 = vsel %vm886, %v1715, %v1717
  %v1747 = vsel %vm886, %v1717, %v1719
  %v1748 = vsel %vm886, %v1721, %v1723
  %v1749 = vsel %vm886, %v1723, %v1725
  %v1750 = vsel %vm886, %v1725, %v1727
  %v1751 = vsel %vm886, %v1727, %v1729
  %v1752 = vsel %vm886, %v1731, %v1733
  %v1753 = vsel %vm886, %v1733, %v1735
  %v1754 = vsel %vm886, %v1735, %v1737
  %v1755 = vsel %vm886, %v1737, %v1739
  %v1772 = vadd.f32 %v1664, %v1740
  %v1773 = vadd.f32 %v1665, %v1741
  %v1774 = vadd.f32 %v1666, %v1742
  %v1775 = vadd.f32 %v1667, %v1743
  %v1776 = vadd.f32 %v1668, %v1744
  %v1777 = vadd.f32 %v1669, %v1745
  %v1778 = vadd.f32 %v1670, %v1746
  %v1779 = vadd.f32 %v1671, %v1747
  %v1780 = vadd.f32 %v1672, %v1748
  %v1781 = vadd.f32 %v1673, %v1749
  %v1782 = vadd.f32 %v1674, %v1750
  %v1783 = vadd.f32 %v1675, %v1751
  %v1784 = vadd.f32 %v1676, %v1752
  %v1785 = vadd.f32 %v1677, %v1753
  %v1786 = vadd.f32 %v1678, %v1754
  %v1787 = vadd.f32 %v1679, %v1755
  %v1788 = vmax.f32 %v1772, 0.0
  %v1789 = vmax.f32 %v1773, 0.0
  %v1790 = vmax.f32 %v1774, 0.0
  %v1791 = vmax.f32 %v1775, 0.0
  %v1792 = vmax.f32 %v1776, 0.0
  %v1793 = vmax.f32 %v1777, 0.0
  %v1794 = vmax.f32 %v1778, 0.0
  %v1795 = vmax.f32 %v1779, 0.0
  %v1796 = vmax.f32 %v1780, 0.0
  %v1797 = vmax.f32 %v1781, 0.0
  %v1798 = vmax.f32 %v1782, 0.0
  %v1799 = vmax.f32 %v1783, 0.0
  %v1800 = vmax.f32 %v1784, 0.0
  %v1801 = vmax.f32 %v1785, 0.0
  %v1802 = vmax.f32 %v1786, 0.0
  %v1803 = vmax.f32 %v1787, 0.0
  %1804 = vst [vmem:[%s11] sm:$0xff] %v1788
  %1805 = vst [vmem:[%s11 + $0x8] sm:$0xff] %v1789
  %1806 = vst [vmem:[%s11 + $0x10] sm:$0xff] %v1790
  %1807 = vst [vmem:[%s11 + $0x18] sm:$0xff] %v1791
  %1808 = vst [vmem:[%s11 + $0x20] sm:$0xff] %v1792
  %1809 = vst [vmem:[%s11 + $0x28] sm:$0xff] %v1793
  %1810 = vst [vmem:[%s11 + $0x30] sm:$0xff] %v1794
  %1811 = vst [vmem:[%s11 + $0x38] sm:$0xff] %v1795
  %1812 = vst [vmem:[%s11 + $0x40] sm:$0xff] %v1796
  %1813 = vst [vmem:[%s11 + $0x48] sm:$0xff] %v1797
  %1814 = vst [vmem:[%s11 + $0x50] sm:$0xff] %v1798
  %1815 = vst [vmem:[%s11 + $0x58] sm:$0xff] %v1799
  %1816 = vst [vmem:[%s11 + $0x60] sm:$0xff] %v1800
  %1817 = vst [vmem:[%s11 + $0x68] sm:$0xff] %v1801
  %1818 = vst [vmem:[%s11 + $0x70] sm:$0xff] %v1802
  %1819 = vst [vmem:[%s11 + $0x78] sm:$0xff] %v1803
  // Predicated region
  $region46: #{bottleneck_forward.1} parent=0 // pred_check
    _
  $region47: #{bottleneck_forward.1} parent=0 // pred_check_branch
    %1821 = sbr.rel (0) target = $region49
  $region48: #{bottleneck_forward.1} parent=0 // pred_region
    _
  $region49: #{bottleneck_forward.1} parent=0 // pred_fallthru
    _
  // Predicated region
  $region50: #{bottleneck_forward.1} parent=0 // pred_check
    _
  $region51: #{bottleneck_forward.1} parent=0 // pred_check_branch
    %1823 = sbr.rel (0) target = $region53
  $region52: #{bottleneck_forward.1} parent=0 // pred_region
    _
  $region53: #{bottleneck_forward.1} parent=0 // pred_fallthru
    _

</llo_original>
